<compile_context>
chip_gen: v7x
topology: tpu7x:2x2x1
jax: 0.10.0
libtpu: 0.0.40
codegen_flags: <defaults>
</compile_context>

<pallas_src>
import functools
import math

import jax
import jax.numpy as jnp
from jax.experimental import pallas as pl
from jax.experimental.pallas import tpu as pltpu


def _round_up(v, m):
    return -(-v // m) * m


def _vmem_limit(block_bytes, slack=4 << 20):
    """Per-kernel VMEM budget: double-buffered blocks + headroom, clamped to
    ~3/4 of this generation's physical VMEM (64 MiB v7x, 128 MiB v5e/v6e)."""
    try:
        cap = int(pltpu.get_tpu_info().vmem_capacity_bytes)
    except Exception:          # info unavailable (e.g. interpret/mock backends)
        cap = 64 << 20
    return int(min(max(2 * block_bytes + slack, 8 << 20), (cap * 3) // 4))


# ----------------------------------------------------------------------------
# KxK conv: row-tiled, halo via (t, t+1) input blocks, tap-fused MXU matmul
# ----------------------------------------------------------------------------

def _conv_kernel(x0_ref, x1_ref, w_ref, b_ref, o_ref, *, taps, ts, relu):
    # x0_ref / x1_ref: (1, nph, TS, Cin) bf16 -- flat-row blocks t and t+1 of
    # the phase-decomposed image (the second block provides the row halo).
    # w_ref: (kh*kw*Cin, Cout) bf16, b_ref: (1, Cout) f32, o_ref: (1, TS, Cout).
    big = jnp.concatenate([x0_ref[0], x1_ref[0]], axis=1)     # (nph, 2*TS, Cin)
    # Tap fusion: one K = kh*kw*Cin contraction instead of kh*kw K=Cin dots.
    lhs = jnp.concatenate([big[ph, r0:r0 + ts, :] for ph, r0 in taps], axis=-1)
    acc = jnp.dot(lhs, w_ref[...], preferred_element_type=jnp.float32)
    acc = acc + b_ref[...]
    if relu:
        acc = jnp.maximum(acc, 0.0)
    o_ref[0] = acc.astype(o_ref.dtype)


def conv2d(x, w, b, stride=1, padding=0, relu=False, out_dtype=jnp.bfloat16,
           tile_rows=512):
    """NHWC KxK conv as a row-tiled, tap-fused Pallas kernel.

    The wrapper zero-pads and (for stride>1) phase-decomposes the image so
    each tap is a contiguous flat-row slice.  The kernel gets two consecutive
    flat-row blocks (tile + halo), lane-concatenates the kh*kw shifted strips
    and does a single K = kh*kw*Cin MXU matmul with f32 accumulation.
    Columns ox >= Wo of each strip are junk and are cropped in the wrapper.
    """
    N, H, W, Cin = x.shape
    kh, kw, _, Cout = w.shape
    s = stride
    Ho = (H + 2 * padding - kh) // s + 1
    Wo = (W + 2 * padding - kw) // s + 1
    Hp, Wp = H + 2 * padding, W + 2 * padding

    Wq = _round_up(-(-Wp // s), 8)            # phase-image width, sublane padded
    y_max, x_max = (kh - 1) // s, (kw - 1) // s
    min_th = max(1, y_max + (1 if x_max else 0))    # halo must fit in one tile
    TH = max(1, tile_rows // Wq)
    TH = min(TH, max(Ho, min_th))
    TH = max(TH, min_th)
    if Wq % 16 and TH % 2:                    # keep bf16 (16,128) tiling happy
        TH += 1
    TS = TH * Wq                              # flat rows per output tile
    nt = -(-Ho // TH)                         # output row tiles
    Hq = max(_round_up(-(-Hp // s), TH), (nt + 1) * TH)   # padded phase rows
    nt_in = Hq // TH                          # input blocks (>= nt + 1)

    pad_h, pad_w = Hq * s - Hp, Wq * s - Wp
    xp = x
    if padding or pad_h or pad_w:
        xp = jnp.pad(x, ((0, 0), (padding, padding + pad_h),
                         (padding, padding + pad_w), (0, 0)))
    # TODO(synk): the stride-phase decomposition re-materializes the padded map
    # in HBM for stride>1; a strided in-kernel DMA would remove this pass.
    if s > 1:
        xph = jnp.stack([xp[:, py::s, px::s, :] for py in range(s)
                         for px in range(s)], axis=1)   # (N, s*s, Hq, Wq, Cin)
    else:
        xph = xp[:, None]
    nph = xph.shape[1]
    xflat = xph.reshape(N, nph, Hq * Wq, Cin).astype(jnp.bfloat16)

    # Tap order (ky outer, kx inner) matches w.reshape(kh*kw*Cin, Cout).
    taps = tuple(((ky % s) * s + (kx % s), (ky // s) * Wq + (kx // s))
                 for ky in range(kh) for kx in range(kw))
    ntaps = kh * kw
    wmat = w.reshape(ntaps * Cin, Cout).astype(jnp.bfloat16)
    bias = b.reshape(1, Cout).astype(jnp.float32)

    out_isz = jnp.dtype(out_dtype).itemsize
    blk = (2 * nph * TS * Cin * 2             # halo input blocks (bf16)
           + ntaps * Cin * Cout * 2           # fused weight
           + TS * ntaps * Cin * 2             # lane-concat LHS
           + TS * Cout * 4                    # f32 accumulator
           + TS * Cout * out_isz)             # output block

    # Cout=64 layers keep a half-lane store; acceptable once tap fusion makes
    # these layers MXU-bound (see review note).
    out = pl.pallas_call(
        functools.partial(_conv_kernel, taps=taps, ts=TS, relu=relu),
        grid=(N, nt),
        in_specs=[
            pl.BlockSpec((1, nph, TS, Cin), lambda n, t: (n, 0, t, 0)),
            pl.BlockSpec((1, nph, TS, Cin), lambda n, t: (n, 0, t + 1, 0)),
            pl.BlockSpec((ntaps * Cin, Cout), lambda n, t: (0, 0)),
            pl.BlockSpec((1, Cout), lambda n, t: (0, 0)),
        ],
        out_specs=pl.BlockSpec((1, TS, Cout), lambda n, t: (n, t, 0)),
        out_shape=jax.ShapeDtypeStruct((N, nt * TS, Cout), out_dtype),
        compiler_params=pltpu.CompilerParams(
            dimension_semantics=("parallel", "parallel"),
            vmem_limit_bytes=_vmem_limit(blk)),
    )(xflat, xflat, wmat, bias)

    out = out.reshape(N, nt * TH, Wq, Cout)[:, :Ho, :Wo, :]
    return out


# ----------------------------------------------------------------------------
# 1x1 conv: batch*H*W folded into MXU rows (lane-dense)
# ----------------------------------------------------------------------------

def _dense_kernel(x_ref, w_ref, b_ref, o_ref, *, relu):
    acc = jnp.dot(x_ref[...], w_ref[...], preferred_element_type=jnp.float32)
    acc = acc + b_ref[...]
    if relu:
        acc = jnp.maximum(acc, 0.0)
    o_ref[...] = acc.astype(o_ref.dtype)


def conv1x1(x, w, b, relu=False, out_dtype=jnp.bfloat16, tile_rows=128):
    """Pointwise conv: every leading dim folded into MXU rows."""
    lead, Cin = x.shape[:-1], x.shape[-1]
    Cout = w.shape[-1]
    R = math.prod(lead)
    TR = min(tile_rows, _round_up(R, 8))
    Rp = _round_up(R, TR)
    xr = x.reshape(R, Cin)
    if Rp != R:
        xr = jnp.pad(xr, ((0, Rp - R), (0, 0)))
    blk = (TR * Cin + Cin * Cout + TR * Cout) * 2 + TR * Cout * 4
    out = pl.pallas_call(
        functools.partial(_dense_kernel, relu=relu),
        grid=(Rp // TR,),
        in_specs=[
            pl.BlockSpec((TR, Cin), lambda i: (i, 0)),
            pl.BlockSpec((Cin, Cout), lambda i: (0, 0)),
            pl.BlockSpec((1, Cout), lambda i: (0, 0)),
        ],
        out_specs=pl.BlockSpec((TR, Cout), lambda i: (i, 0)),
        out_shape=jax.ShapeDtypeStruct((Rp, Cout), out_dtype),
        compiler_params=pltpu.CompilerParams(
            dimension_semantics=("parallel",),
            vmem_limit_bytes=_vmem_limit(blk)),
    )(xr.astype(jnp.bfloat16), w.reshape(Cin, Cout).astype(jnp.bfloat16),
      b.reshape(1, Cout).astype(jnp.float32))
    return out[:R].reshape(*lead, Cout)


# ----------------------------------------------------------------------------
# ConvTranspose2d(k=2, s=2): per-pixel matmul, pixel-shuffle written by kernel
# ----------------------------------------------------------------------------

def _deconv_kernel(x_ref, w0_ref, w1_ref, b_ref, o_ref, *, relu):
    # x_ref: (TH*W, Cin); w{0,1}: (Cin, 2*Cout); o_ref: (TH, 2, W, 2*Cout).
    th, _, wdim, c2 = o_ref.shape
    x = x_ref[...]
    for dy, wref in ((0, w0_ref), (1, w1_ref)):
        r = jnp.dot(x, wref[...], preferred_element_type=jnp.float32)
        r = r + b_ref[...]
        if relu:
            r = jnp.maximum(r, 0.0)
        o_ref[:, dy] = r.reshape(th, wdim, c2).astype(o_ref.dtype)


def deconv2x2(x, w, b, relu=False, out_dtype=jnp.bfloat16, tile_rows=512):
    """ConvTranspose2d(kernel=2, stride=2) with the pixel-shuffled layout
    written directly from the kernel (no XLA 6-D transpose / HBM round trip).
    Weight layout is (Cin, 2, 2, Cout); PyTorch ConvTranspose2d checkpoints
    ((Cin, Cout, kh, kw)) must be permuted before use."""
    N, H, W, Cin = x.shape
    Cout = w.shape[-1]
    NH = N * H
    TH = NH                       # fallback: full row dim is always spec-legal
    for d in range(min(NH, max(1, tile_rows // max(W, 1))), 0, -1):
        if NH % d == 0 and (d * W) % 8 == 0:
            TH = d
            break
    xr = x.reshape(NH * W, Cin).astype(jnp.bfloat16)
    w0 = w[:, 0].reshape(Cin, 2 * Cout).astype(jnp.bfloat16)
    w1 = w[:, 1].reshape(Cin, 2 * Cout).astype(jnp.bfloat16)
    bias = jnp.tile(b, 2).reshape(1, 2 * Cout).astype(jnp.float32)
    blk = (TH * W * Cin + 2 * Cin * 2 * Cout) * 2 + TH * W * 2 * Cout * 6
    out = pl.pallas_call(
        functools.partial(_deconv_kernel, relu=relu),
        grid=(NH // TH,),
        in_specs=[
            pl.BlockSpec((TH * W, Cin), lambda i: (i, 0)),
            pl.BlockSpec((Cin, 2 * Cout), lambda i: (0, 0)),
            pl.BlockSpec((Cin, 2 * Cout), lambda i: (0, 0)),
            pl.BlockSpec((1, 2 * Cout), lambda i: (0, 0)),
        ],
        out_specs=pl.BlockSpec((TH, 2, W, 2 * Cout), lambda i: (i, 0, 0, 0)),
        out_shape=jax.ShapeDtypeStruct((NH, 2, W, 2 * Cout), out_dtype),
        compiler_params=pltpu.CompilerParams(
            dimension_semantics=("parallel",),
            vmem_limit_bytes=_vmem_limit(blk)),
    )(xr, w0, w1, bias)
    return out.reshape(N, 2 * H, 2 * W, Cout)


# ----------------------------------------------------------------------------
# PillarVFE kernel: one MXU matmul + ReLU + max over points per pillar tile
# ----------------------------------------------------------------------------

def _pfn_kernel(x_ref, w_ref, o_ref):
    tm, P, cin = x_ref.shape
    h = jnp.dot(x_ref[...].reshape(tm * P, cin), w_ref[...],
                preferred_element_type=jnp.float32)
    h = jnp.maximum(h, 0.0)
    o_ref[...] = jnp.max(h.reshape(tm, P, -1), axis=1).astype(o_ref.dtype)


def pfn_forward(feats, w, tile_m=128):
    M, P, Cin = feats.shape
    Cout = w.shape[1]
    tm = min(tile_m, _round_up(M, 8))
    Mp = _round_up(M, tm)
    if Mp != M:
        feats = jnp.pad(feats, ((0, Mp - M), (0, 0), (0, 0)))
    blk = tm * P * Cin * 2 + Cin * Cout * 2 + tm * P * Cout * 4 + tm * Cout * 2
    out = pl.pallas_call(
        _pfn_kernel,
        grid=(Mp // tm,),
        in_specs=[
            pl.BlockSpec((tm, P, Cin), lambda i: (i, 0, 0)),
            pl.BlockSpec((Cin, Cout), lambda i: (0, 0)),
        ],
        out_specs=pl.BlockSpec((tm, Cout), lambda i: (i, 0)),
        out_shape=jax.ShapeDtypeStruct((Mp, Cout), jnp.bfloat16),
        compiler_params=pltpu.CompilerParams(
            dimension_semantics=("parallel",),
            vmem_limit_bytes=_vmem_limit(blk)),
    )(feats.astype(jnp.bfloat16), w.astype(jnp.bfloat16))
    return out[:M]


# ----------------------------------------------------------------------------
# Where2comm: confidence mask (logit threshold) + agent attention, L-tiled
# ----------------------------------------------------------------------------

def _atten_fuse_kernel(x_ref, h_ref, o_ref, *, anchor_num, logit_thresh):
    # x_ref: (1, A, LT, C) bf16 features; h_ref: (1, A, LT, Ch) f32 head logits.
    A, C = x_ref.shape[1], x_ref.shape[3]
    inv_sqrt = 1.0 / float(C) ** 0.5
    xs = []
    for a in range(A):
        xa = x_ref[0, a]
        if a > 0:
            logits = h_ref[0, a]
            conf = logits[:, 0:1]
            for k in range(1, anchor_num):
                conf = jnp.maximum(conf, logits[:, k:k + 1])
            # sigmoid(conf) > thre  <=>  conf > logit(thre): no exp / divide.
            xa = xa * (conf > logit_thresh).astype(xa.dtype)      # bf16 mask
        xs.append(xa)                                  # ego (a == 0) keeps all
    scores = [jnp.sum((xs[0] * xs[a]).astype(jnp.float32), axis=-1,
                      keepdims=True) * inv_sqrt for a in range(A)]
    mx = scores[0]
    for a in range(1, A):
        mx = jnp.maximum(mx, scores[a])
    es = [jnp.exp(s - mx) for s in scores]
    den = es[0]
    for a in range(1, A):
        den = den + es[a]
    inv_den = pl.reciprocal(den, approx=True)          # EUP slot
    out = (es[0] * inv_den).astype(xs[0].dtype) * xs[0]
    for a in range(1, A):
        out = out + (es[a] * inv_den).astype(xs[a].dtype) * xs[a]
    o_ref[0] = out.astype(o_ref.dtype)


def where2comm_fusion(x_2d, head_single, record_len, anchor_num, thre=0.01,
                      tile_l=512):
    """Where2comm fusion (multi_scale=False; identity pairwise_t_matrix so the
    spatial warp is a no-op).  Confidence masking fused into the per-position
    agent attention; tiled over BEV positions."""
    # TODO(synk): grid_sample warping for non-identity pairwise_t_matrix.
    Ntot, H, W, C = x_2d.shape
    B = len(record_len)
    A = record_len[0]              # uniform cav count per sample (synthetic)
    L = H * W
    Ch = head_single.shape[-1]
    logit_thresh = math.log(thre / (1.0 - thre))
    LT = min(tile_l, _round_up(L, 8))
    Lp = _round_up(L, LT)
    x = x_2d.reshape(B, A, L, C).astype(jnp.bfloat16)
    hl = head_single.reshape(B, A, L, Ch).astype(jnp.float32)
    if Lp != L:
        x = jnp.pad(x, ((0, 0), (0, 0), (0, Lp - L), (0, 0)))
        hl = jnp.pad(hl, ((0, 0), (0, 0), (0, Lp - L), (0, 0)))
    blk = A * LT * C * 2 + A * LT * Ch * 4 + LT * C * 2 + 4 * LT * C
    fused = pl.pallas_call(
        functools.partial(_atten_fuse_kernel, anchor_num=anchor_num,
                          logit_thresh=logit_thresh),
        grid=(B, Lp // LT),
        in_specs=[
            pl.BlockSpec((1, A, LT, C), lambda b, t: (b, 0, t, 0)),
            pl.BlockSpec((1, A, LT, Ch), lambda b, t: (b, 0, t, 0)),
        ],
        out_specs=pl.BlockSpec((1, LT, C), lambda b, t: (b, t, 0)),
        out_shape=jax.ShapeDtypeStruct((B, Lp, C), jnp.bfloat16),
        compiler_params=pltpu.CompilerParams(
            dimension_semantics=("parallel", "parallel"),
            vmem_limit_bytes=_vmem_limit(blk)),
    )(x, hl)
    fused = fused[:, :L].reshape(B, H, W, C)
    # Communication rate from the raw per-agent confidence masks (cheap
    # wrapper-side reduce; avoids a lane-sparse scalar store per grid step).
    # Matches the previous implementation: ego raw mask included in the sum.
    conf = jnp.max(head_single.reshape(B, A, L, Ch)[..., :anchor_num], axis=-1)
    comm_rate = jnp.mean((conf > logit_thresh).astype(jnp.float32))
    return fused, comm_rate


# ----------------------------------------------------------------------------
# Model sub-modules
# ----------------------------------------------------------------------------

def pillar_vfe(voxel_features, voxel_coords, voxel_num_points, pfn_w,
               voxel_size, pc_range):
    M, P, _ = voxel_features.shape
    vx, vy, vz = voxel_size
    mask = (jnp.arange(P)[None, :] < voxel_num_points[:, None]).astype(jnp.float32)
    pts = voxel_features * mask[..., None]
    xyz = pts[..., :3]
    mean = xyz.sum(axis=1, keepdims=True) / jnp.maximum(
        voxel_num_points[:, None, None].astype(jnp.float32), 1.0)
    f_cluster = xyz - mean
    cx = voxel_coords[:, 3].astype(jnp.float32) * vx + vx / 2 + pc_range[0]
    cy = voxel_coords[:, 2].astype(jnp.float32) * vy + vy / 2 + pc_range[1]
    cz = voxel_coords[:, 1].astype(jnp.float32) * vz + vz / 2 + pc_range[2]
    f_center = jnp.stack([xyz[..., 0] - cx[:, None],
                          xyz[..., 1] - cy[:, None],
                          xyz[..., 2] - cz[:, None]], axis=-1)
    feats = jnp.concatenate([pts, f_cluster, f_center], axis=-1)   # (M, P, 10)
    feats = feats * mask[..., None]
    return pfn_forward(feats, pfn_w)                               # (M, 64) bf16


def point_pillar_scatter(pillar_feats, coords, n_agents, H, W):
    # Data-dependent scatter kept as XLA glue (no dense Pallas mapping).
    C = pillar_feats.shape[-1]
    canvas = jnp.zeros((n_agents, H * W, C), pillar_feats.dtype)
    sidx = coords[:, 2] * W + coords[:, 3]
    canvas = canvas.at[coords[:, 0], sidx].set(pillar_feats)
    return canvas.reshape(n_agents, H, W, C)                       # NHWC


def bev_backbone(x, p, tile_rows=512):
    h1 = conv2d(x, p['b1c1_w'], p['b1c1_b'], stride=2, padding=1, relu=True,
                tile_rows=tile_rows)
    h1 = conv2d(h1, p['b1c2_w'], p['b1c2_b'], stride=1, padding=1, relu=True,
                tile_rows=tile_rows)
    h2 = conv2d(h1, p['b2c1_w'], p['b2c1_b'], stride=2, padding=1, relu=True,
                tile_rows=tile_rows)
    h2 = conv2d(h2, p['b2c2_w'], p['b2c2_b'], stride=1, padding=1, relu=True,
                tile_rows=tile_rows)
    u1 = conv1x1(h1, p['up1_w'], p['up1_b'], relu=True)
    u2 = deconv2x2(h2, p['up2_w'], p['up2_b'], relu=True)
    return jnp.concatenate([u1, u2], axis=-1)            # (N, H/2, W/2, 256)


# ----------------------------------------------------------------------------
# Full forward (PointPillarWhere2comm.forward)
# ----------------------------------------------------------------------------

def point_pillar_where2comm_forward(params, data):
    voxel_features = data['voxel_features']
    voxel_coords = data['voxel_coords']
    voxel_num_points = data['voxel_num_points']
    record_len = data['record_len']               # static python list
    n_agents = sum(record_len)
    anchor_num = params['anchor_num']
    nh = anchor_num + 7 * anchor_num              # cls + reg channels (16)

    pillar_features = pillar_vfe(voxel_features, voxel_coords, voxel_num_points,
                                 params['pfn_w'], params['voxel_size'],
                                 params['pc_range'])
    spatial_features = point_pillar_scatter(pillar_features, voxel_coords,
                                            n_agents, params['grid_h'],
                                            params['grid_w'])
    spatial_features_2d = bev_backbone(spatial_features, params,
                                       tile_rows=params['conv_tile_rows'])
    # shrink_header / compression / dcn disabled in this config.

    # Fused cls+reg head: one lane-dense (256 -> 16, zero-padded to 128) 1x1
    # matmul with the batch folded into MXU rows.
    head_w, head_b = params['head_w'], params['head_b']
    head_single = conv1x1(spatial_features_2d, head_w, head_b,
                          relu=False, out_dtype=jnp.float32)       # (N,8,8,128)
    psm_single = head_single[..., :anchor_num]
    rm_single = head_single[..., anchor_num:nh]

    fused_feature, comm_rate = where2comm_fusion(spatial_features_2d,
                                                 head_single, record_len,
                                                 anchor_num)
    head_fused = conv1x1(fused_feature, head_w, head_b,
                         relu=False, out_dtype=jnp.float32)
    psm = head_fused[..., :anchor_num]
    rm = head_fused[..., anchor_num:nh]

    B = len(record_len)
    A = record_len[0]

    def pick(x, i):
        return x.reshape(B, A, *x.shape[1:])[:, i]

    to_nchw = lambda t: jnp.transpose(t, (0, 3, 1, 2))
    return {
        'psm': to_nchw(psm),
        'rm': to_nchw(rm),
        'mask': 0,
        'comm_rate': comm_rate,
        'psm_single_v': to_nchw(pick(psm_single, 0)),
        'psm_single_i': to_nchw(pick(psm_single, 1)),
        'rm_single_v': to_nchw(pick(rm_single, 0)),
        'rm_single_i': to_nchw(pick(rm_single, 1)),
    }


# ----------------------------------------------------------------------------
# Main: deterministic synthetic inputs + parameters
# ----------------------------------------------------------------------------

if __name__ == "__main__":
    key = jax.random.PRNGKey(0)
    ks = jax.random.split(key, 16)

    record_len = [2, 2]                 # 2 samples x (vehicle, infra)
    n_agents = sum(record_len)
    grid_h = grid_w = 16
    P = 8                               # max points per pillar
    pillars_per_agent = 64
    M = n_agents * pillars_per_agent
    anchor_num = 2
    voxel_size = (1.0, 1.0, 4.0)
    pc_range = (0.0, 0.0, -3.0, 16.0, 16.0, 1.0)

    # ---- synthetic "processed lidar" ----
    coords_list = []
    for a in range(n_agents):
        perm = jax.random.permutation(jax.random.fold_in(ks[0], a),
                                      grid_h * grid_w)[:pillars_per_agent]
        ys = perm // grid_w
        xs = perm % grid_w
        coords_list.append(jnp.stack(
            [jnp.full_like(ys, a), jnp.zeros_like(ys), ys, xs], axis=1))
    voxel_coords = jnp.concatenate(coords_list, axis=0).astype(jnp.int32)  # (M,4)

    centers_x = voxel_coords[:, 3].astype(jnp.float32) * voxel_size[0] + 0.5
    centers_y = voxel_coords[:, 2].astype(jnp.float32) * voxel_size[1] + 0.5
    noise = jax.random.uniform(ks[1], (M, P, 2), minval=-0.5, maxval=0.5)
    z = jax.random.uniform(ks[2], (M, P, 1), minval=-3.0, maxval=1.0)
    intensity = jax.random.uniform(ks[3], (M, P, 1))
    pts_xy = jnp.stack([centers_x, centers_y], -1)[:, None, :] + noise
    voxel_features = jnp.concatenate([pts_xy, z, intensity], axis=-1)     # (M,P,4)
    voxel_num_points = jax.random.randint(ks[4], (M,), 1, P + 1)

    # identity pairwise transforms -> spatial warping is a no-op
    pairwise_t_matrix = jnp.broadcast_to(jnp.eye(4, dtype=jnp.float32),
                                         (len(record_len), 2, 2, 4, 4))

    # ---- deterministic parameters (BatchNorms folded as identity) ----
    def w(k, shape, scale=0.05):
        return jax.random.normal(k, shape, jnp.float32) * scale

    cls_w = w(ks[12], (256, anchor_num))
    cls_b = jnp.zeros((anchor_num,), jnp.float32)
    reg_w = w(ks[13], (256, 7 * anchor_num))
    reg_b = jnp.zeros((7 * anchor_num,), jnp.float32)
    nh = anchor_num + 7 * anchor_num
    head_pad = 128 - nh
    head_w = jnp.pad(jnp.concatenate([cls_w, reg_w], axis=-1),
                     ((0, 0), (0, head_pad)))
    head_b = jnp.pad(jnp.concatenate([cls_b, reg_b]), (0, head_pad))

    params = {
        'pfn_w':  w(ks[5], (10, 64)),
        'b1c1_w': w(ks[6], (3, 3, 64, 64)),   'b1c1_b': jnp.zeros((64,), jnp.float32),
        'b1c2_w': w(ks[7], (3, 3, 64, 64)),   'b1c2_b': jnp.zeros((64,), jnp.float32),
        'b2c1_w': w(ks[8], (3, 3, 64, 128)),  'b2c1_b': jnp.zeros((128,), jnp.float32),
        'b2c2_w': w(ks[9], (3, 3, 128, 128)), 'b2c2_b': jnp.zeros((128,), jnp.float32),
        'up1_w':  w(ks[10], (64, 128)),       'up1_b': jnp.zeros((128,), jnp.float32),
        'up2_w':  w(ks[11], (128, 2, 2, 128)),'up2_b': jnp.zeros((128,), jnp.float32),
        'head_w': head_w, 'head_b': head_b, 'anchor_num': anchor_num,
        'voxel_size': voxel_size, 'pc_range': pc_range,
        'grid_h': grid_h, 'grid_w': grid_w,
        # small tile for the toy 16x16 grid so the row-tile + halo path is
        # exercised; use 512-1024 at production BEV sizes.
        'conv_tile_rows': 64,
    }

    data = {
        'voxel_features': voxel_features,
        'voxel_coords': voxel_coords,
        'voxel_num_points': voxel_num_points,
        'record_len': record_len,
        'pairwise_t_matrix': pairwise_t_matrix,
    }

    out = point_pillar_where2comm_forward(params, data)
    jax.block_until_ready((out['psm'], out['rm'], out['comm_rate'],
                           out['psm_single_v'], out['psm_single_i'],
                           out['rm_single_v'], out['rm_single_i']))
    assert out['psm'].shape == (2, anchor_num, 8, 8)
    assert out['rm'].shape == (2, 7 * anchor_num, 8, 8)
    assert out['psm_single_v'].shape == (2, anchor_num, 8, 8)
    assert out['rm_single_v'].shape == (2, 7 * anchor_num, 8, 8)
    print("KERNEL_OK")
</pallas_src>

<mosaic_0001>
module attributes {stable_mosaic.version = 11 : i64} {
  func.func @_pfn_kernel(%arg0: i32, %arg1: memref<128x8x10xbf16, #tpu.memory_space<vmem>>, %arg2: memref<10x64xbf16, #tpu.memory_space<vmem>>, %arg3: memref<128x64xbf16, #tpu.memory_space<vmem>>) attributes {dimension_semantics = [#tpu.dimension_semantics<parallel>], iteration_bounds = array<i64: 2>, scalar_prefetch = 0 : i64, scratch_operands = 0 : i64, tpu.core_type = #tpu.core_type<tc>, window_params = [{transform_indices = @transform_0, window_bounds = array<i64: 128, 8, 10>}, {pipeline_mode = #tpu.pipeline_mode<synchronous>, transform_indices = @transform_1, window_bounds = array<i64: 10, 64>}, {transform_indices = @transform_2, window_bounds = array<i64: 128, 64>}]} {
    %c0 = arith.constant 0 : index
    %c0_0 = arith.constant 0 : index
    %c0_1 = arith.constant 0 : index
    %0 = vector.load %arg1[%c0, %c0_0, %c0_1] : memref<128x8x10xbf16, #tpu.memory_space<vmem>>, vector<128x8x10xbf16>
    %1 = vector.shape_cast %0 : vector<128x8x10xbf16> to vector<1024x10xbf16>
    %c0_2 = arith.constant 0 : index
    %c0_3 = arith.constant 0 : index
    %2 = vector.load %arg2[%c0_2, %c0_3] : memref<10x64xbf16, #tpu.memory_space<vmem>>, vector<10x64xbf16>
    %cst = arith.constant dense<0.000000e+00> : vector<1024x64xf32>
    %3 = tpu.matmul %1, %2, %cst {dimension_numbers = #tpu.dot_dimension_numbers<[1], [0], [0], [1], [0, 0, 1, 1], [], []>} : vector<1024x10xbf16>, vector<10x64xbf16>, vector<1024x64xf32> -> vector<1024x64xf32>
    %cst_4 = arith.constant 0.000000e+00 : f32
    %4 = vector.broadcast %cst_4 : f32 to vector<1024x64xf32>
    %5 = arith.maximumf %3, %4 : vector<1024x64xf32>
    %6 = vector.shape_cast %5 : vector<1024x64xf32> to vector<128x8x64xf32>
    %cst_5 = arith.constant dense<0xFF800000> : vector<128x64xf32>
    %7 = vector.multi_reduction <maximumf>, %6, %cst_5 [1] : vector<128x8x64xf32> to vector<128x64xf32>
    %8 = arith.truncf %7 : vector<128x64xf32> to vector<128x64xbf16>
    %c0_6 = arith.constant 0 : index
    %c0_7 = arith.constant 0 : index
    %9 = vector.load %arg3[%c0_6, %c0_7] : memref<128x64xbf16, #tpu.memory_space<vmem>>, vector<128x64xbf16>
    tpu.vector_store %arg3[%c0_6, %c0_7], %8 {strides = array<i32>} : memref<128x64xbf16, #tpu.memory_space<vmem>>, vector<128x64xbf16>,
    return
  }
  func.func @transform_0(%arg0: i32) -> (i32, i32, i32) {
    %c0_i32 = arith.constant 0 : i32
    %c0_i32_0 = arith.constant 0 : i32
    %c0_i32_1 = arith.constant 0 : i32
    return %arg0, %c0_i32, %c0_i32_0 : i32, i32, i32
  }
  func.func @transform_1(%arg0: i32) -> (i32, i32) {
    %c0_i32 = arith.constant 0 : i32
    %c0_i32_0 = arith.constant 0 : i32
    %c0_i32_1 = arith.constant 0 : i32
    return %c0_i32, %c0_i32_0 : i32, i32
  }
  func.func @transform_2(%arg0: i32) -> (i32, i32) {
    %c0_i32 = arith.constant 0 : i32
    %c0_i32_0 = arith.constant 0 : i32
    return %arg0, %c0_i32 : i32, i32
  }
}

</mosaic_0001>

<llo_original>
// kernel: tpu_custom_call.1
$region0: #{tpu_custom_call.1}
  #allocation0 [shape = 'u32[]', space=smem, size = 0x4, offset = 0x4, fixed_abs, tag = 'smem constant byte address 0x4 - core index']
  #allocation1 [shape = 'u32[144,128]{1,0:T(1,128)}', space=vmem, size = 0x12000, scoped, tag = 'internal scratch']
  %s0 = inlined_call_operand.vmem [shape: bf16[256,8,10], index: 0, kind: input, shape index: {}]
  %s1 = inlined_call_operand.vmem [shape: bf16[10,64], index: 1, kind: input, shape index: {}]
  %s2 = inlined_call_operand.vmem [shape: bf16[256,64], index: 2, kind: output, shape index: {}]
  %s3 = sld [smem:[#allocation0]]
  $region41: #{tpu_custom_call.1} parent=0
    _
  %s5 = ssub.s32 1, %s3
  %s6 = scalar_select 0, %s5, %s3
  loop: start=0, step=1, limit=4
  $region2: #{tpu_custom_call.1} parent=0 // loop_pre_header
    _
  $region3: #{tpu_custom_call.1} parent=0 // loop_header
    %s8 = sphi 0, %s12
    %p9 = scmp.ge.s32.totalorder %s8, 4
    %s18 = sphi 0, %s20
    %s21 = sphi 0, %s18
    %s22 = sphi 0, %s21
    %s38 = sphi 0, %s22
    %s42 = sphi 0, %s42
    %s44 = sphi 0, %s42
    %s45 = sphi 0, %s44
    %s59 = sphi 0, %s45
    %s65 = sphi 0, %s67
    %s68 = sphi 0, %s65
    %s69 = sphi 0, %s68
    %s85 = sphi 0, %s69
  $region4: #{tpu_custom_call.1} parent=0 // loop_header_branch
    %11 = sbr.rel (%p9) target = $region8
  $region5: #{tpu_custom_call.1} parent=0 // loop_body
    %s13 = ssub.s32 %s8, 1
    %s14 = ssub.s32 %s8, 2
    %s15 = sadd.s32 %s8, 1
    %s16 = ssub.s32 %s8, %s15
    %p17 = scmp.eq.s32.totalorder %s16, 0
    %s19 = sadd.s32 %s18, 1
    %s20 = scalar_select %p17, %s18, %s19
    %p23 = pneg %p17
    %p24 = scmp.eq.s32.totalorder %s8, 1
    %p25 = por %p23, %p24
    %p26 = scmp.ne.s32.totalorder %s18, %s21
    %p27 = scmp.eq.s32.totalorder %s8, 0
    %p28 = por %p26, %p27
    %p29 = scmp.ne.s32.totalorder %s18, %s21
    %p30 = scmp.eq.s32.totalorder %s13, 1
    %p31 = por %p29, %p30
    %p32 = scmp.ne.s32.totalorder %s21, %s22
    %p33 = scmp.eq.s32.totalorder %s13, 0
    %p34 = por %p32, %p33
    %p35 = scmp.ne.s32.totalorder %s21, %s22
    %p36 = scmp.eq.s32.totalorder %s14, 1
    %p37 = por %p35, %p36
    %p39 = scmp.ne.s32.totalorder %s22, %s38
    %p40 = scmp.eq.s32.totalorder %s14, 0
    %p41 = por %p39, %p40
    %s43 = sadd.s32 %s42, 1
    %p46 = scmp.eq.s32.totalorder %s8, 1
    %p47 = scmp.ne.s32.totalorder %s42, %s44
    %p48 = scmp.eq.s32.totalorder %s8, 0
    %p49 = por %p47, %p48
    %p50 = scmp.ne.s32.totalorder %s42, %s44
    %p51 = scmp.eq.s32.totalorder %s13, 1
    %p52 = por %p50, %p51
    %p53 = scmp.ne.s32.totalorder %s44, %s45
    %p54 = scmp.eq.s32.totalorder %s13, 0
    %p55 = por %p53, %p54
    %p56 = scmp.ne.s32.totalorder %s44, %s45
    %p57 = scmp.eq.s32.totalorder %s14, 1
    %p58 = por %p56, %p57
    %p60 = scmp.ne.s32.totalorder %s45, %s59
    %p61 = scmp.eq.s32.totalorder %s14, 0
    %p62 = por %p60, %p61
    %s63 = ssub.s32 %s8, %s15
    %p64 = scmp.eq.s32.totalorder %s63, 0
    %s66 = sadd.s32 %s65, 1
    %s67 = scalar_select %p64, %s65, %s66
    %p70 = pneg %p64
    %p71 = scmp.eq.s32.totalorder %s8, 1
    %p72 = por %p70, %p71
    %p73 = scmp.ne.s32.totalorder %s65, %s68
    %p74 = scmp.eq.s32.totalorder %s8, 0
    %p75 = por %p73, %p74
    %p76 = scmp.ne.s32.totalorder %s65, %s68
    %p77 = scmp.eq.s32.totalorder %s13, 1
    %p78 = por %p76, %p77
    %p79 = scmp.ne.s32.totalorder %s68, %s69
    %p80 = scmp.eq.s32.totalorder %s13, 0
    %p81 = por %p79, %p80
    %p82 = scmp.ne.s32.totalorder %s68, %s69
    %p83 = scmp.eq.s32.totalorder %s14, 1
    %p84 = por %p82, %p83
    %p86 = scmp.ne.s32.totalorder %s69, %s85
    %p87 = scmp.eq.s32.totalorder %s14, 0
    %p88 = por %p86, %p87
    %p89 = scmp.le.s32.totalorder 1, %s8
    %p90 = scmp.lt.s32.totalorder %s8, 3
    %p91 = pnand %p89, %p90
    %p92 = pneg %p91
    // Predicated region
    $region9: #{tpu_custom_call.1} parent=5 // pred_check
      _
    $region10: #{tpu_custom_call.1} parent=5 // pred_check_branch
      %94 = sbr.rel (%p91) target = $region12
    $region11: #{tpu_custom_call.1} parent=5 // pred_region
      %s95 = ssub.s32 %s8, 1
      // Predicated region
      $region13: #{tpu_custom_call.1} parent=11 // pred_check
        %p96 = pneg %p55
      $region14: #{tpu_custom_call.1} parent=11 // pred_check_branch
        %98 = sbr.rel (%p96) target = $region16
      $region15: #{tpu_custom_call.1} parent=11 // pred_region
        _
      $region16: #{tpu_custom_call.1} parent=11 // pred_fallthru
        _
    $region12: #{tpu_custom_call.1} parent=5 // pred_fallthru
      _
    %p99 = scmp.lt.s32.totalorder %s8, 2
    // Predicated region
    $region17: #{tpu_custom_call.1} parent=5 // pred_check
      %p100 = pneg %p99
    $region18: #{tpu_custom_call.1} parent=5 // pred_check_branch
      %102 = sbr.rel (%p100) target = $region20
    $region19: #{tpu_custom_call.1} parent=5 // pred_region
      // Predicated region
      $region21: #{tpu_custom_call.1} parent=19 // pred_check
        %p103 = pneg %p28
      $region22: #{tpu_custom_call.1} parent=19 // pred_check_branch
        %105 = sbr.rel (%p103) target = $region24
      $region23: #{tpu_custom_call.1} parent=19 // pred_region
        %s106 = smul.u32 128, %s8
        %p107 = scmp.lt.s32.totalorder %s106, 255
        %s108 = scalar_select %p107, %s106, 255
        %s109 = smul.addr %s108, 4
        %s110 = scalar_lea.vmem %s0, %s109
        %s111 = smul.u32 128, %s8
      $region24: #{tpu_custom_call.1} parent=19 // pred_fallthru
        _
    $region20: #{tpu_custom_call.1} parent=5 // pred_fallthru
      _
    %p112 = scmp.le.s32.totalorder 1, %s8
    %p113 = scmp.lt.s32.totalorder %s8, 3
    %p114 = pnand %p112, %p113
    %p115 = pneg %p114
    // Predicated region
    $region25: #{tpu_custom_call.1} parent=5 // pred_check
      _
    $region26: #{tpu_custom_call.1} parent=5 // pred_check_branch
      %117 = sbr.rel (%p114) target = $region28
    $region27: #{tpu_custom_call.1} parent=5 // pred_region
      %s118 = ssub.s32 %s8, 1
      %s119 = smul.u32 128, %s13
      %p120 = scmp.lt.s32.totalorder %s119, 255
      %s121 = scalar_select %p120, %s119, 255
      %s122 = smul.addr %s121, 4
      %s123 = scalar_lea.vmem %s0, %s122
      %p124 = pneg %p34
      %p125 = pneg %p31
      %p126 = pneg %p55
      %p127 = pneg %p52
      %p128 = pneg %p81
      %p129 = pneg %p78
      %s130 = smul.u32 16, %s13
      %p131 = scmp.lt.s32.totalorder %s130, 31
      %s132 = scalar_select %p131, %s130, 31
      %s133 = smul.addr %s132, 4
      %s134 = scalar_lea.vmem %s2, %s133
      %s135 = smul.u32 128, %s13
      %p136 = scmp.lt.s32.totalorder %s135, 255
      %s137 = scalar_select %p136, %s135, 255
      %s138 = smul.addr %s137, 4
      %s139 = scalar_lea.vmem %s0, %s138
      %s140 = smul.u32 128, %s13
      %s141 = smul.u32 16, %s13
      %p142 = scmp.lt.s32.totalorder %s141, 31
      %s143 = scalar_select %p142, %s141, 31
      %s144 = smul.addr %s143, 4
      %s145 = scalar_lea.vmem %s2, %s144
      %s146 = smul.u32 16, %s13
      %v148 = vld [vmem:[%s139] sm:$0xf]
      %v149 = vld [vmem:[%s139 + $0x4] sm:$0xf]
      %v150 = vld [vmem:[%s139 + $0x8] sm:$0xf]
      %v151 = vld [vmem:[%s139 + $0xc] sm:$0xf]
      %v152 = vld [vmem:[%s139 + $0x10] sm:$0xf]
      %v153 = vld [vmem:[%s139 + $0x14] sm:$0xf]
      %v154 = vld [vmem:[%s139 + $0x18] sm:$0xf]
      %v155 = vld [vmem:[%s139 + $0x1c] sm:$0xf]
      %v156 = vld [vmem:[%s139 + $0x20] sm:$0xf]
      %v157 = vld [vmem:[%s139 + $0x24] sm:$0xf]
      %v158 = vld [vmem:[%s139 + $0x28] sm:$0xf]
      %v159 = vld [vmem:[%s139 + $0x2c] sm:$0xf]
      %v160 = vld [vmem:[%s139 + $0x30] sm:$0xf]
      %v161 = vld [vmem:[%s139 + $0x34] sm:$0xf]
      %v162 = vld [vmem:[%s139 + $0x38] sm:$0xf]
      %v163 = vld [vmem:[%s139 + $0x3c] sm:$0xf]
      %v164 = vld [vmem:[%s139 + $0x40] sm:$0xf]
      %v165 = vld [vmem:[%s139 + $0x44] sm:$0xf]
      %v166 = vld [vmem:[%s139 + $0x48] sm:$0xf]
      %v167 = vld [vmem:[%s139 + $0x4c] sm:$0xf]
      %v168 = vld [vmem:[%s139 + $0x50] sm:$0xf]
      %v169 = vld [vmem:[%s139 + $0x54] sm:$0xf]
      %v170 = vld [vmem:[%s139 + $0x58] sm:$0xf]
      %v171 = vld [vmem:[%s139 + $0x5c] sm:$0xf]
      %v172 = vld [vmem:[%s139 + $0x60] sm:$0xf]
      %v173 = vld [vmem:[%s139 + $0x64] sm:$0xf]
      %v174 = vld [vmem:[%s139 + $0x68] sm:$0xf]
      %v175 = vld [vmem:[%s139 + $0x6c] sm:$0xf]
      %v176 = vld [vmem:[%s139 + $0x70] sm:$0xf]
      %v177 = vld [vmem:[%s139 + $0x74] sm:$0xf]
      %v178 = vld [vmem:[%s139 + $0x78] sm:$0xf]
      %v179 = vld [vmem:[%s139 + $0x7c] sm:$0xf]
      %v180 = vld [vmem:[%s139 + $0x80] sm:$0xf]
      %v181 = vld [vmem:[%s139 + $0x84] sm:$0xf]
      %v182 = vld [vmem:[%s139 + $0x88] sm:$0xf]
      %v183 = vld [vmem:[%s139 + $0x8c] sm:$0xf]
      %v184 = vld [vmem:[%s139 + $0x90] sm:$0xf]
      %v185 = vld [vmem:[%s139 + $0x94] sm:$0xf]
      %v186 = vld [vmem:[%s139 + $0x98] sm:$0xf]
      %v187 = vld [vmem:[%s139 + $0x9c] sm:$0xf]
      %v188 = vld [vmem:[%s139 + $0xa0] sm:$0xf]
      %v189 = vld [vmem:[%s139 + $0xa4] sm:$0xf]
      %v190 = vld [vmem:[%s139 + $0xa8] sm:$0xf]
      %v191 = vld [vmem:[%s139 + $0xac] sm:$0xf]
      %v192 = vld [vmem:[%s139 + $0xb0] sm:$0xf]
      %v193 = vld [vmem:[%s139 + $0xb4] sm:$0xf]
      %v194 = vld [vmem:[%s139 + $0xb8] sm:$0xf]
      %v195 = vld [vmem:[%s139 + $0xbc] sm:$0xf]
      %v196 = vld [vmem:[%s139 + $0xc0] sm:$0xf]
      %v197 = vld [vmem:[%s139 + $0xc4] sm:$0xf]
      %v198 = vld [vmem:[%s139 + $0xc8] sm:$0xf]
      %v199 = vld [vmem:[%s139 + $0xcc] sm:$0xf]
      %v200 = vld [vmem:[%s139 + $0xd0] sm:$0xf]
      %v201 = vld [vmem:[%s139 + $0xd4] sm:$0xf]
      %v202 = vld [vmem:[%s139 + $0xd8] sm:$0xf]
      %v203 = vld [vmem:[%s139 + $0xdc] sm:$0xf]
      %v204 = vld [vmem:[%s139 + $0xe0] sm:$0xf]
      %v205 = vld [vmem:[%s139 + $0xe4] sm:$0xf]
      %v206 = vld [vmem:[%s139 + $0xe8] sm:$0xf]
      %v207 = vld [vmem:[%s139 + $0xec] sm:$0xf]
      %v208 = vld [vmem:[%s139 + $0xf0] sm:$0xf]
      %v209 = vld [vmem:[%s139 + $0xf4] sm:$0xf]
      %v210 = vld [vmem:[%s139 + $0xf8] sm:$0xf]
      %v211 = vld [vmem:[%s139 + $0xfc] sm:$0xf]
      %v212 = vld [vmem:[%s139 + $0x100] sm:$0xf]
      %v213 = vld [vmem:[%s139 + $0x104] sm:$0xf]
      %v214 = vld [vmem:[%s139 + $0x108] sm:$0xf]
      %v215 = vld [vmem:[%s139 + $0x10c] sm:$0xf]
      %v216 = vld [vmem:[%s139 + $0x110] sm:$0xf]
      %v217 = vld [vmem:[%s139 + $0x114] sm:$0xf]
      %v218 = vld [vmem:[%s139 + $0x118] sm:$0xf]
      %v219 = vld [vmem:[%s139 + $0x11c] sm:$0xf]
      %v220 = vld [vmem:[%s139 + $0x120] sm:$0xf]
      %v221 = vld [vmem:[%s139 + $0x124] sm:$0xf]
      %v222 = vld [vmem:[%s139 + $0x128] sm:$0xf]
      %v223 = vld [vmem:[%s139 + $0x12c] sm:$0xf]
      %v224 = vld [vmem:[%s139 + $0x130] sm:$0xf]
      %v225 = vld [vmem:[%s139 + $0x134] sm:$0xf]
      %v226 = vld [vmem:[%s139 + $0x138] sm:$0xf]
      %v227 = vld [vmem:[%s139 + $0x13c] sm:$0xf]
      %v228 = vld [vmem:[%s139 + $0x140] sm:$0xf]
      %v229 = vld [vmem:[%s139 + $0x144] sm:$0xf]
      %v230 = vld [vmem:[%s139 + $0x148] sm:$0xf]
      %v231 = vld [vmem:[%s139 + $0x14c] sm:$0xf]
      %v232 = vld [vmem:[%s139 + $0x150] sm:$0xf]
      %v233 = vld [vmem:[%s139 + $0x154] sm:$0xf]
      %v234 = vld [vmem:[%s139 + $0x158] sm:$0xf]
      %v235 = vld [vmem:[%s139 + $0x15c] sm:$0xf]
      %v236 = vld [vmem:[%s139 + $0x160] sm:$0xf]
      %v237 = vld [vmem:[%s139 + $0x164] sm:$0xf]
      %v238 = vld [vmem:[%s139 + $0x168] sm:$0xf]
      %v239 = vld [vmem:[%s139 + $0x16c] sm:$0xf]
      %v240 = vld [vmem:[%s139 + $0x170] sm:$0xf]
      %v241 = vld [vmem:[%s139 + $0x174] sm:$0xf]
      %v242 = vld [vmem:[%s139 + $0x178] sm:$0xf]
      %v243 = vld [vmem:[%s139 + $0x17c] sm:$0xf]
      %v244 = vld [vmem:[%s139 + $0x180] sm:$0xf]
      %v245 = vld [vmem:[%s139 + $0x184] sm:$0xf]
      %v246 = vld [vmem:[%s139 + $0x188] sm:$0xf]
      %v247 = vld [vmem:[%s139 + $0x18c] sm:$0xf]
      %v248 = vld [vmem:[%s139 + $0x190] sm:$0xf]
      %v249 = vld [vmem:[%s139 + $0x194] sm:$0xf]
      %v250 = vld [vmem:[%s139 + $0x198] sm:$0xf]
      %v251 = vld [vmem:[%s139 + $0x19c] sm:$0xf]
      %v252 = vld [vmem:[%s139 + $0x1a0] sm:$0xf]
      %v253 = vld [vmem:[%s139 + $0x1a4] sm:$0xf]
      %v254 = vld [vmem:[%s139 + $0x1a8] sm:$0xf]
      %v255 = vld [vmem:[%s139 + $0x1ac] sm:$0xf]
      %v256 = vld [vmem:[%s139 + $0x1b0] sm:$0xf]
      %v257 = vld [vmem:[%s139 + $0x1b4] sm:$0xf]
      %v258 = vld [vmem:[%s139 + $0x1b8] sm:$0xf]
      %v259 = vld [vmem:[%s139 + $0x1bc] sm:$0xf]
      %v260 = vld [vmem:[%s139 + $0x1c0] sm:$0xf]
      %v261 = vld [vmem:[%s139 + $0x1c4] sm:$0xf]
      %v262 = vld [vmem:[%s139 + $0x1c8] sm:$0xf]
      %v263 = vld [vmem:[%s139 + $0x1cc] sm:$0xf]
      %v264 = vld [vmem:[%s139 + $0x1d0] sm:$0xf]
      %v265 = vld [vmem:[%s139 + $0x1d4] sm:$0xf]
      %v266 = vld [vmem:[%s139 + $0x1d8] sm:$0xf]
      %v267 = vld [vmem:[%s139 + $0x1dc] sm:$0xf]
      %v268 = vld [vmem:[%s139 + $0x1e0] sm:$0xf]
      %v269 = vld [vmem:[%s139 + $0x1e4] sm:$0xf]
      %v270 = vld [vmem:[%s139 + $0x1e8] sm:$0xf]
      %v271 = vld [vmem:[%s139 + $0x1ec] sm:$0xf]
      %v272 = vld [vmem:[%s139 + $0x1f0] sm:$0xf]
      %v273 = vld [vmem:[%s139 + $0x1f4] sm:$0xf]
      %v274 = vld [vmem:[%s139 + $0x1f8] sm:$0xf]
      %v275 = vld [vmem:[%s139 + $0x1fc] sm:$0xf]
      %v276 = vld [vmem:[%s1] sm:$0xf]
      %v277 = vld [vmem:[%s1 + $0x4] sm:$0x1]
      %v406 = vunpack.c.l.b16 %v148
      %v407 = vunpack.c.l.b16 %v149
      %v408 = vunpack.c.l.b16 %v150
      %v409 = vunpack.c.l.b16 %v151
      %v410 = vunpack.c.l.b16 %v152
      %v411 = vunpack.c.l.b16 %v153
      %v412 = vunpack.c.l.b16 %v154
      %v413 = vunpack.c.l.b16 %v155
      %v414 = vunpack.c.l.b16 %v156
      %v415 = vunpack.c.l.b16 %v157
      %v416 = vunpack.c.l.b16 %v158
      %v417 = vunpack.c.l.b16 %v159
      %v418 = vunpack.c.l.b16 %v160
      %v419 = vunpack.c.l.b16 %v161
      %v420 = vunpack.c.l.b16 %v162
      %v421 = vunpack.c.l.b16 %v163
      %v422 = vunpack.c.l.b16 %v164
      %v423 = vunpack.c.l.b16 %v165
      %v424 = vunpack.c.l.b16 %v166
      %v425 = vunpack.c.l.b16 %v167
      %v426 = vunpack.c.l.b16 %v168
      %v427 = vunpack.c.l.b16 %v169
      %v428 = vunpack.c.l.b16 %v170
      %v429 = vunpack.c.l.b16 %v171
      %v430 = vunpack.c.l.b16 %v172
      %v431 = vunpack.c.l.b16 %v173
      %v432 = vunpack.c.l.b16 %v174
      %v433 = vunpack.c.l.b16 %v175
      %v434 = vunpack.c.l.b16 %v176
      %v435 = vunpack.c.l.b16 %v177
      %v436 = vunpack.c.l.b16 %v178
      %v437 = vunpack.c.l.b16 %v179
      %v438 = vunpack.c.l.b16 %v180
      %v439 = vunpack.c.l.b16 %v181
      %v440 = vunpack.c.l.b16 %v182
      %v441 = vunpack.c.l.b16 %v183
      %v442 = vunpack.c.l.b16 %v184
      %v443 = vunpack.c.l.b16 %v185
      %v444 = vunpack.c.l.b16 %v186
      %v445 = vunpack.c.l.b16 %v187
      %v446 = vunpack.c.l.b16 %v188
      %v447 = vunpack.c.l.b16 %v189
      %v448 = vunpack.c.l.b16 %v190
      %v449 = vunpack.c.l.b16 %v191
      %v450 = vunpack.c.l.b16 %v192
      %v451 = vunpack.c.l.b16 %v193
      %v452 = vunpack.c.l.b16 %v194
      %v453 = vunpack.c.l.b16 %v195
      %v454 = vunpack.c.l.b16 %v196
      %v455 = vunpack.c.l.b16 %v197
      %v456 = vunpack.c.l.b16 %v198
      %v457 = vunpack.c.l.b16 %v199
      %v458 = vunpack.c.l.b16 %v200
      %v459 = vunpack.c.l.b16 %v201
      %v460 = vunpack.c.l.b16 %v202
      %v461 = vunpack.c.l.b16 %v203
      %v462 = vunpack.c.l.b16 %v204
      %v463 = vunpack.c.l.b16 %v205
      %v464 = vunpack.c.l.b16 %v206
      %v465 = vunpack.c.l.b16 %v207
      %v466 = vunpack.c.l.b16 %v208
      %v467 = vunpack.c.l.b16 %v209
      %v468 = vunpack.c.l.b16 %v210
      %v469 = vunpack.c.l.b16 %v211
      %v470 = vunpack.c.l.b16 %v212
      %v471 = vunpack.c.l.b16 %v213
      %v472 = vunpack.c.l.b16 %v214
      %v473 = vunpack.c.l.b16 %v215
      %v474 = vunpack.c.l.b16 %v216
      %v475 = vunpack.c.l.b16 %v217
      %v476 = vunpack.c.l.b16 %v218
      %v477 = vunpack.c.l.b16 %v219
      %v478 = vunpack.c.l.b16 %v220
      %v479 = vunpack.c.l.b16 %v221
      %v480 = vunpack.c.l.b16 %v222
      %v481 = vunpack.c.l.b16 %v223
      %v482 = vunpack.c.l.b16 %v224
      %v483 = vunpack.c.l.b16 %v225
      %v484 = vunpack.c.l.b16 %v226
      %v485 = vunpack.c.l.b16 %v227
      %v486 = vunpack.c.l.b16 %v228
      %v487 = vunpack.c.l.b16 %v229
      %v488 = vunpack.c.l.b16 %v230
      %v489 = vunpack.c.l.b16 %v231
      %v490 = vunpack.c.l.b16 %v232
      %v491 = vunpack.c.l.b16 %v233
      %v492 = vunpack.c.l.b16 %v234
      %v493 = vunpack.c.l.b16 %v235
      %v494 = vunpack.c.l.b16 %v236
      %v495 = vunpack.c.l.b16 %v237
      %v496 = vunpack.c.l.b16 %v238
      %v497 = vunpack.c.l.b16 %v239
      %v498 = vunpack.c.l.b16 %v240
      %v499 = vunpack.c.l.b16 %v241
      %v500 = vunpack.c.l.b16 %v242
      %v501 = vunpack.c.l.b16 %v243
      %v502 = vunpack.c.l.b16 %v244
      %v503 = vunpack.c.l.b16 %v245
      %v504 = vunpack.c.l.b16 %v246
      %v505 = vunpack.c.l.b16 %v247
      %v506 = vunpack.c.l.b16 %v248
      %v507 = vunpack.c.l.b16 %v249
      %v508 = vunpack.c.l.b16 %v250
      %v509 = vunpack.c.l.b16 %v251
      %v510 = vunpack.c.l.b16 %v252
      %v511 = vunpack.c.l.b16 %v253
      %v512 = vunpack.c.l.b16 %v254
      %v513 = vunpack.c.l.b16 %v255
      %v514 = vunpack.c.l.b16 %v256
      %v515 = vunpack.c.l.b16 %v257
      %v516 = vunpack.c.l.b16 %v258
      %v517 = vunpack.c.l.b16 %v259
      %v518 = vunpack.c.l.b16 %v260
      %v519 = vunpack.c.l.b16 %v261
      %v520 = vunpack.c.l.b16 %v262
      %v521 = vunpack.c.l.b16 %v263
      %v522 = vunpack.c.l.b16 %v264
      %v523 = vunpack.c.l.b16 %v265
      %v524 = vunpack.c.l.b16 %v266
      %v525 = vunpack.c.l.b16 %v267
      %v526 = vunpack.c.l.b16 %v268
      %v527 = vunpack.c.l.b16 %v269
      %v528 = vunpack.c.l.b16 %v270
      %v529 = vunpack.c.l.b16 %v271
      %v530 = vunpack.c.l.b16 %v272
      %v531 = vunpack.c.l.b16 %v273
      %v532 = vunpack.c.l.b16 %v274
      %v533 = vunpack.c.l.b16 %v275
      %v534 = vpack.c.b16 %v407, %v406
      %v535 = vpack.c.b16 %v409, %v408
      %v536 = vpack.c.b16 %v411, %v410
      %v537 = vpack.c.b16 %v413, %v412
      %v538 = vpack.c.b16 %v415, %v414
      %v539 = vpack.c.b16 %v417, %v416
      %v540 = vpack.c.b16 %v419, %v418
      %v541 = vpack.c.b16 %v421, %v420
      %v542 = vpack.c.b16 %v423, %v422
      %v543 = vpack.c.b16 %v425, %v424
      %v544 = vpack.c.b16 %v427, %v426
      %v545 = vpack.c.b16 %v429, %v428
      %v546 = vpack.c.b16 %v431, %v430
      %v547 = vpack.c.b16 %v433, %v432
      %v548 = vpack.c.b16 %v435, %v434
      %v549 = vpack.c.b16 %v437, %v436
      %v550 = vpack.c.b16 %v439, %v438
      %v551 = vpack.c.b16 %v441, %v440
      %v552 = vpack.c.b16 %v443, %v442
      %v553 = vpack.c.b16 %v445, %v444
      %v554 = vpack.c.b16 %v447, %v446
      %v555 = vpack.c.b16 %v449, %v448
      %v556 = vpack.c.b16 %v451, %v450
      %v557 = vpack.c.b16 %v453, %v452
      %v558 = vpack.c.b16 %v455, %v454
      %v559 = vpack.c.b16 %v457, %v456
      %v560 = vpack.c.b16 %v459, %v458
      %v561 = vpack.c.b16 %v461, %v460
      %v562 = vpack.c.b16 %v463, %v462
      %v563 = vpack.c.b16 %v465, %v464
      %v564 = vpack.c.b16 %v467, %v466
      %v565 = vpack.c.b16 %v469, %v468
      %v566 = vpack.c.b16 %v471, %v470
      %v567 = vpack.c.b16 %v473, %v472
      %v568 = vpack.c.b16 %v475, %v474
      %v569 = vpack.c.b16 %v477, %v476
      %v570 = vpack.c.b16 %v479, %v478
      %v571 = vpack.c.b16 %v481, %v480
      %v572 = vpack.c.b16 %v483, %v482
      %v573 = vpack.c.b16 %v485, %v484
      %v574 = vpack.c.b16 %v487, %v486
      %v575 = vpack.c.b16 %v489, %v488
      %v576 = vpack.c.b16 %v491, %v490
      %v577 = vpack.c.b16 %v493, %v492
      %v578 = vpack.c.b16 %v495, %v494
      %v579 = vpack.c.b16 %v497, %v496
      %v580 = vpack.c.b16 %v499, %v498
      %v581 = vpack.c.b16 %v501, %v500
      %v582 = vpack.c.b16 %v503, %v502
      %v583 = vpack.c.b16 %v505, %v504
      %v584 = vpack.c.b16 %v507, %v506
      %v585 = vpack.c.b16 %v509, %v508
      %v586 = vpack.c.b16 %v511, %v510
      %v587 = vpack.c.b16 %v513, %v512
      %v588 = vpack.c.b16 %v515, %v514
      %v589 = vpack.c.b16 %v517, %v516
      %v590 = vpack.c.b16 %v519, %v518
      %v591 = vpack.c.b16 %v521, %v520
      %v592 = vpack.c.b16 %v523, %v522
      %v593 = vpack.c.b16 %v525, %v524
      %v594 = vpack.c.b16 %v527, %v526
      %v595 = vpack.c.b16 %v529, %v528
      %v596 = vpack.c.b16 %v531, %v530
      %v597 = vpack.c.b16 %v533, %v532
      %v600 = vunpack.c.l.b16 %v276
      %v601 = vunpack.c.l.b16 %v277
      %v602 = vpack.c.b16 %v601, %v600
      %vm603 = vcmask 80896
      %v605 = vsel %vm603, %v534, 0
      %v608 = vsel %vm603, %v535, 0
      %v611 = vsel %vm603, %v536, 0
      %v614 = vsel %vm603, %v537, 0
      %v617 = vsel %vm603, %v538, 0
      %v620 = vsel %vm603, %v539, 0
      %v623 = vsel %vm603, %v540, 0
      %v626 = vsel %vm603, %v541, 0
      %v629 = vsel %vm603, %v542, 0
      %v632 = vsel %vm603, %v543, 0
      %v635 = vsel %vm603, %v544, 0
      %v638 = vsel %vm603, %v545, 0
      %v641 = vsel %vm603, %v546, 0
      %v644 = vsel %vm603, %v547, 0
      %v647 = vsel %vm603, %v548, 0
      %v650 = vsel %vm603, %v549, 0
      %v653 = vsel %vm603, %v550, 0
      %v656 = vsel %vm603, %v551, 0
      %v659 = vsel %vm603, %v552, 0
      %v662 = vsel %vm603, %v553, 0
      %v665 = vsel %vm603, %v554, 0
      %v668 = vsel %vm603, %v555, 0
      %v671 = vsel %vm603, %v556, 0
      %v674 = vsel %vm603, %v557, 0
      %v677 = vsel %vm603, %v558, 0
      %v680 = vsel %vm603, %v559, 0
      %v683 = vsel %vm603, %v560, 0
      %v686 = vsel %vm603, %v561, 0
      %v689 = vsel %vm603, %v562, 0
      %v692 = vsel %vm603, %v563, 0
      %v695 = vsel %vm603, %v564, 0
      %v698 = vsel %vm603, %v565, 0
      %v701 = vsel %vm603, %v566, 0
      %v704 = vsel %vm603, %v567, 0
      %v707 = vsel %vm603, %v568, 0
      %v710 = vsel %vm603, %v569, 0
      %v713 = vsel %vm603, %v570, 0
      %v716 = vsel %vm603, %v571, 0
      %v719 = vsel %vm603, %v572, 0
      %v722 = vsel %vm603, %v573, 0
      %v725 = vsel %vm603, %v574, 0
      %v728 = vsel %vm603, %v575, 0
      %v731 = vsel %vm603, %v576, 0
      %v734 = vsel %vm603, %v577, 0
      %v737 = vsel %vm603, %v578, 0
      %v740 = vsel %vm603, %v579, 0
      %v743 = vsel %vm603, %v580, 0
      %v746 = vsel %vm603, %v581, 0
      %v749 = vsel %vm603, %v582, 0
      %v752 = vsel %vm603, %v583, 0
      %v755 = vsel %vm603, %v584, 0
      %v758 = vsel %vm603, %v585, 0
      %v761 = vsel %vm603, %v586, 0
      %v764 = vsel %vm603, %v587, 0
      %v767 = vsel %vm603, %v588, 0
      %v770 = vsel %vm603, %v589, 0
      %v773 = vsel %vm603, %v590, 0
      %v776 = vsel %vm603, %v591, 0
      %v779 = vsel %vm603, %v592, 0
      %v782 = vsel %vm603, %v593, 0
      %v785 = vsel %vm603, %v594, 0
      %v788 = vsel %vm603, %v595, 0
      %v791 = vsel %vm603, %v596, 0
      %v794 = vsel %vm603, %v597, 0
      %vm796 = vcmask 1044480
      %v798 = vsel %vm796, %v602, 0
      %800 = vmatprep.subr.bf16.mxu0 0
      %801 = vmatpush1.bf16.msra.mxu0 %v798
      %802 = vmatprep.subr.bf16.mxu0 0
      %803 = vmatpush1.bf16.msra.mxu0 0
      %804 = vmatprep.subr.bf16.mxu0 0
      %805 = vmatpush1.bf16.msra.mxu0 0
      %806 = vmatprep.subr.bf16.mxu0 0
      %807 = vmatpush1.bf16.msra.mxu0 0
      %808 = vmatprep.subr.bf16.mxu0 0
      %809 = vmatpush1.bf16.msra.mxu0 0
      %810 = vmatprep.subr.bf16.mxu0 0
      %811 = vmatpush1.bf16.msra.mxu0 0
      %812 = vmatprep.subr.bf16.mxu0 0
      %813 = vmatpush1.bf16.msra.mxu0 0
      %814 = vmatprep.subr.bf16.mxu0 0
      %815 = vmatpush1.bf16.msra.mxu0 0
      %816 = vmatprep.subr.bf16.mxu0 0
      %817 = vmatpush1.bf16.msra.mxu0 0
      %818 = vmatprep.subr.bf16.mxu0 0
      %819 = vmatpush1.bf16.msra.mxu0 0
      %820 = vmatprep.subr.bf16.mxu0 0
      %821 = vmatpush1.bf16.msra.mxu0 0
      %822 = vmatprep.subr.bf16.mxu0 0
      %823 = vmatpush1.bf16.msra.mxu0 0
      %824 = vmatprep.subr.bf16.mxu0 0
      %825 = vmatpush1.bf16.msra.mxu0 0
      %826 = vmatprep.subr.bf16.mxu0 0
      %827 = vmatpush1.bf16.msra.mxu0 0
      %828 = vmatprep.subr.bf16.mxu0 0
      %829 = vmatpush1.bf16.msra.mxu0 0
      %830 = vmatprep.subr.bf16.mxu0 0
      %831 = vmatpush1.bf16.msra.mxu0 0
      %832 = vmatprep.mubr.bf16.mxu0 0
      %833 = vmatmul.mubr.bf16.gmra.mrb[0].mxu0 %v605
      %v834 = vpop.f32.mrb[0].mxu0
      %v835 = vadd.f32 0.0, %v834
      %v836 = vpop.f32.mrb[0].mxu0
      %v837 = vpop.f32.mrb[0].mxu0
      %v838 = vadd.f32 0.0, %v837
      %v839 = vpop.f32.mrb[0].mxu0
      %840 = vmatprep.mubr.bf16.mxu0 0
      %841 = vmatmul.mubr.bf16.gmra.mrb[0].mxu0 %v608
      %v842 = vpop.f32.mrb[0].mxu0
      %v843 = vadd.f32 0.0, %v842
      %v844 = vpop.f32.mrb[0].mxu0
      %v845 = vpop.f32.mrb[0].mxu0
      %v846 = vadd.f32 0.0, %v845
      %v847 = vpop.f32.mrb[0].mxu0
      %848 = vmatprep.mubr.bf16.mxu0 0
      %849 = vmatmul.mubr.bf16.gmra.mrb[0].mxu0 %v611
      %v850 = vpop.f32.mrb[0].mxu0
      %v851 = vadd.f32 0.0, %v850
      %v852 = vpop.f32.mrb[0].mxu0
      %v853 = vpop.f32.mrb[0].mxu0
      %v854 = vadd.f32 0.0, %v853
      %v855 = vpop.f32.mrb[0].mxu0
      %856 = vmatprep.mubr.bf16.mxu0 0
      %857 = vmatmul.mubr.bf16.gmra.mrb[0].mxu0 %v614
      %v858 = vpop.f32.mrb[0].mxu0
      %v859 = vadd.f32 0.0, %v858
      %v860 = vpop.f32.mrb[0].mxu0
      %v861 = vpop.f32.mrb[0].mxu0
      %v862 = vadd.f32 0.0, %v861
      %v863 = vpop.f32.mrb[0].mxu0
      %864 = vmatprep.mubr.bf16.mxu0 0
      %865 = vmatmul.mubr.bf16.gmra.mrb[0].mxu0 %v617
      %v866 = vpop.f32.mrb[0].mxu0
      %v867 = vadd.f32 0.0, %v866
      %v868 = vpop.f32.mrb[0].mxu0
      %v869 = vpop.f32.mrb[0].mxu0
      %v870 = vadd.f32 0.0, %v869
      %v871 = vpop.f32.mrb[0].mxu0
      %872 = vmatprep.mubr.bf16.mxu0 0
      %873 = vmatmul.mubr.bf16.gmra.mrb[0].mxu0 %v620
      %v874 = vpop.f32.mrb[0].mxu0
      %v875 = vadd.f32 0.0, %v874
      %v876 = vpop.f32.mrb[0].mxu0
      %v877 = vpop.f32.mrb[0].mxu0
      %v878 = vadd.f32 0.0, %v877
      %v879 = vpop.f32.mrb[0].mxu0
      %880 = vmatprep.mubr.bf16.mxu0 0
      %881 = vmatmul.mubr.bf16.gmra.mrb[0].mxu0 %v623
      %v882 = vpop.f32.mrb[0].mxu0
      %v883 = vadd.f32 0.0, %v882
      %v884 = vpop.f32.mrb[0].mxu0
      %v885 = vpop.f32.mrb[0].mxu0
      %v886 = vadd.f32 0.0, %v885
      %v887 = vpop.f32.mrb[0].mxu0
      %888 = vmatprep.mubr.bf16.mxu0 0
      %889 = vmatmul.mubr.bf16.gmra.mrb[0].mxu0 %v626
      %v890 = vpop.f32.mrb[0].mxu0
      %v891 = vadd.f32 0.0, %v890
      %v892 = vpop.f32.mrb[0].mxu0
      %v893 = vpop.f32.mrb[0].mxu0
      %v894 = vadd.f32 0.0, %v893
      %v895 = vpop.f32.mrb[0].mxu0
      %896 = vmatprep.mubr.bf16.mxu0 0
      %897 = vmatmul.mubr.bf16.gmra.mrb[0].mxu0 %v629
      %v898 = vpop.f32.mrb[0].mxu0
      %v899 = vadd.f32 0.0, %v898
      %v900 = vpop.f32.mrb[0].mxu0
      %v901 = vpop.f32.mrb[0].mxu0
      %v902 = vadd.f32 0.0, %v901
      %v903 = vpop.f32.mrb[0].mxu0
      %904 = vmatprep.mubr.bf16.mxu0 0
      %905 = vmatmul.mubr.bf16.gmra.mrb[0].mxu0 %v632
      %v906 = vpop.f32.mrb[0].mxu0
      %v907 = vadd.f32 0.0, %v906
      %v908 = vpop.f32.mrb[0].mxu0
      %v909 = vpop.f32.mrb[0].mxu0
      %v910 = vadd.f32 0.0, %v909
      %v911 = vpop.f32.mrb[0].mxu0
      %912 = vmatprep.mubr.bf16.mxu0 0
      %913 = vmatmul.mubr.bf16.gmra.mrb[0].mxu0 %v635
      %v914 = vpop.f32.mrb[0].mxu0
      %v915 = vadd.f32 0.0, %v914
      %v916 = vpop.f32.mrb[0].mxu0
      %v917 = vpop.f32.mrb[0].mxu0
      %v918 = vadd.f32 0.0, %v917
      %v919 = vpop.f32.mrb[0].mxu0
      %920 = vmatprep.mubr.bf16.mxu0 0
      %921 = vmatmul.mubr.bf16.gmra.mrb[0].mxu0 %v638
      %v922 = vpop.f32.mrb[0].mxu0
      %v923 = vadd.f32 0.0, %v922
      %v924 = vpop.f32.mrb[0].mxu0
      %v925 = vpop.f32.mrb[0].mxu0
      %v926 = vadd.f32 0.0, %v925
      %v927 = vpop.f32.mrb[0].mxu0
      %928 = vmatprep.mubr.bf16.mxu0 0
      %929 = vmatmul.mubr.bf16.gmra.mrb[0].mxu0 %v641
      %v930 = vpop.f32.mrb[0].mxu0
      %v931 = vadd.f32 0.0, %v930
      %v932 = vpop.f32.mrb[0].mxu0
      %v933 = vpop.f32.mrb[0].mxu0
      %v934 = vadd.f32 0.0, %v933
      %v935 = vpop.f32.mrb[0].mxu0
      %936 = vmatprep.mubr.bf16.mxu0 0
      %937 = vmatmul.mubr.bf16.gmra.mrb[0].mxu0 %v644
      %v938 = vpop.f32.mrb[0].mxu0
      %v939 = vadd.f32 0.0, %v938
      %v940 = vpop.f32.mrb[0].mxu0
      %v941 = vpop.f32.mrb[0].mxu0
      %v942 = vadd.f32 0.0, %v941
      %v943 = vpop.f32.mrb[0].mxu0
      %944 = vmatprep.mubr.bf16.mxu0 0
      %945 = vmatmul.mubr.bf16.gmra.mrb[0].mxu0 %v647
      %v946 = vpop.f32.mrb[0].mxu0
      %v947 = vadd.f32 0.0, %v946
      %v948 = vpop.f32.mrb[0].mxu0
      %v949 = vpop.f32.mrb[0].mxu0
      %v950 = vadd.f32 0.0, %v949
      %v951 = vpop.f32.mrb[0].mxu0
      %952 = vmatprep.mubr.bf16.mxu0 0
      %953 = vmatmul.mubr.bf16.gmra.mrb[0].mxu0 %v650
      %v954 = vpop.f32.mrb[0].mxu0
      %v955 = vadd.f32 0.0, %v954
      %v956 = vpop.f32.mrb[0].mxu0
      %v957 = vpop.f32.mrb[0].mxu0
      %v958 = vadd.f32 0.0, %v957
      %v959 = vpop.f32.mrb[0].mxu0
      %960 = vmatprep.mubr.bf16.mxu0 0
      %961 = vmatmul.mubr.bf16.gmra.mrb[0].mxu0 %v653
      %v962 = vpop.f32.mrb[0].mxu0
      %v963 = vadd.f32 0.0, %v962
      %v964 = vpop.f32.mrb[0].mxu0
      %v965 = vpop.f32.mrb[0].mxu0
      %v966 = vadd.f32 0.0, %v965
      %v967 = vpop.f32.mrb[0].mxu0
      %968 = vmatprep.mubr.bf16.mxu0 0
      %969 = vmatmul.mubr.bf16.gmra.mrb[0].mxu0 %v656
      %v970 = vpop.f32.mrb[0].mxu0
      %v971 = vadd.f32 0.0, %v970
      %v972 = vpop.f32.mrb[0].mxu0
      %v973 = vpop.f32.mrb[0].mxu0
      %v974 = vadd.f32 0.0, %v973
      %v975 = vpop.f32.mrb[0].mxu0
      %976 = vmatprep.mubr.bf16.mxu0 0
      %977 = vmatmul.mubr.bf16.gmra.mrb[0].mxu0 %v659
      %v978 = vpop.f32.mrb[0].mxu0
      %v979 = vadd.f32 0.0, %v978
      %v980 = vpop.f32.mrb[0].mxu0
      %v981 = vpop.f32.mrb[0].mxu0
      %v982 = vadd.f32 0.0, %v981
      %v983 = vpop.f32.mrb[0].mxu0
      %984 = vmatprep.mubr.bf16.mxu0 0
      %985 = vmatmul.mubr.bf16.gmra.mrb[0].mxu0 %v662
      %v986 = vpop.f32.mrb[0].mxu0
      %v987 = vadd.f32 0.0, %v986
      %v988 = vpop.f32.mrb[0].mxu0
      %v989 = vpop.f32.mrb[0].mxu0
      %v990 = vadd.f32 0.0, %v989
      %v991 = vpop.f32.mrb[0].mxu0
      %992 = vmatprep.mubr.bf16.mxu0 0
      %993 = vmatmul.mubr.bf16.gmra.mrb[0].mxu0 %v665
      %v994 = vpop.f32.mrb[0].mxu0
      %v995 = vadd.f32 0.0, %v994
      %v996 = vpop.f32.mrb[0].mxu0
      %v997 = vpop.f32.mrb[0].mxu0
      %v998 = vadd.f32 0.0, %v997
      %v999 = vpop.f32.mrb[0].mxu0
      %1000 = vmatprep.mubr.bf16.mxu0 0
      %1001 = vmatmul.mubr.bf16.gmra.mrb[0].mxu0 %v668
      %v1002 = vpop.f32.mrb[0].mxu0
      %v1003 = vadd.f32 0.0, %v1002
      %v1004 = vpop.f32.mrb[0].mxu0
      %v1005 = vpop.f32.mrb[0].mxu0
      %v1006 = vadd.f32 0.0, %v1005
      %v1007 = vpop.f32.mrb[0].mxu0
      %1008 = vmatprep.mubr.bf16.mxu0 0
      %1009 = vmatmul.mubr.bf16.gmra.mrb[0].mxu0 %v671
      %v1010 = vpop.f32.mrb[0].mxu0
      %v1011 = vadd.f32 0.0, %v1010
      %v1012 = vpop.f32.mrb[0].mxu0
      %v1013 = vpop.f32.mrb[0].mxu0
      %v1014 = vadd.f32 0.0, %v1013
      %v1015 = vpop.f32.mrb[0].mxu0
      %1016 = vmatprep.mubr.bf16.mxu0 0
      %1017 = vmatmul.mubr.bf16.gmra.mrb[0].mxu0 %v674
      %v1018 = vpop.f32.mrb[0].mxu0
      %v1019 = vadd.f32 0.0, %v1018
      %v1020 = vpop.f32.mrb[0].mxu0
      %v1021 = vpop.f32.mrb[0].mxu0
      %v1022 = vadd.f32 0.0, %v1021
      %v1023 = vpop.f32.mrb[0].mxu0
      %1024 = vmatprep.mubr.bf16.mxu0 0
      %1025 = vmatmul.mubr.bf16.gmra.mrb[0].mxu0 %v677
      %v1026 = vpop.f32.mrb[0].mxu0
      %v1027 = vadd.f32 0.0, %v1026
      %v1028 = vpop.f32.mrb[0].mxu0
      %v1029 = vpop.f32.mrb[0].mxu0
      %v1030 = vadd.f32 0.0, %v1029
      %v1031 = vpop.f32.mrb[0].mxu0
      %1032 = vmatprep.mubr.bf16.mxu0 0
      %1033 = vmatmul.mubr.bf16.gmra.mrb[0].mxu0 %v680
      %v1034 = vpop.f32.mrb[0].mxu0
      %v1035 = vadd.f32 0.0, %v1034
      %v1036 = vpop.f32.mrb[0].mxu0
      %v1037 = vpop.f32.mrb[0].mxu0
      %v1038 = vadd.f32 0.0, %v1037
      %v1039 = vpop.f32.mrb[0].mxu0
      %1040 = vmatprep.mubr.bf16.mxu0 0
      %1041 = vmatmul.mubr.bf16.gmra.mrb[0].mxu0 %v683
      %v1042 = vpop.f32.mrb[0].mxu0
      %v1043 = vadd.f32 0.0, %v1042
      %v1044 = vpop.f32.mrb[0].mxu0
      %v1045 = vpop.f32.mrb[0].mxu0
      %v1046 = vadd.f32 0.0, %v1045
      %v1047 = vpop.f32.mrb[0].mxu0
      %1048 = vmatprep.mubr.bf16.mxu0 0
      %1049 = vmatmul.mubr.bf16.gmra.mrb[0].mxu0 %v686
      %v1050 = vpop.f32.mrb[0].mxu0
      %v1051 = vadd.f32 0.0, %v1050
      %v1052 = vpop.f32.mrb[0].mxu0
      %v1053 = vpop.f32.mrb[0].mxu0
      %v1054 = vadd.f32 0.0, %v1053
      %v1055 = vpop.f32.mrb[0].mxu0
      %1056 = vmatprep.mubr.bf16.mxu0 0
      %1057 = vmatmul.mubr.bf16.gmra.mrb[0].mxu0 %v689
      %v1058 = vpop.f32.mrb[0].mxu0
      %v1059 = vadd.f32 0.0, %v1058
      %v1060 = vpop.f32.mrb[0].mxu0
      %v1061 = vpop.f32.mrb[0].mxu0
      %v1062 = vadd.f32 0.0, %v1061
      %v1063 = vpop.f32.mrb[0].mxu0
      %1064 = vmatprep.mubr.bf16.mxu0 0
      %1065 = vmatmul.mubr.bf16.gmra.mrb[0].mxu0 %v692
      %v1066 = vpop.f32.mrb[0].mxu0
      %v1067 = vadd.f32 0.0, %v1066
      %v1068 = vpop.f32.mrb[0].mxu0
      %v1069 = vpop.f32.mrb[0].mxu0
      %v1070 = vadd.f32 0.0, %v1069
      %v1071 = vpop.f32.mrb[0].mxu0
      %1072 = vmatprep.mubr.bf16.mxu0 0
      %1073 = vmatmul.mubr.bf16.gmra.mrb[0].mxu0 %v695
      %v1074 = vpop.f32.mrb[0].mxu0
      %v1075 = vadd.f32 0.0, %v1074
      %v1076 = vpop.f32.mrb[0].mxu0
      %v1077 = vpop.f32.mrb[0].mxu0
      %v1078 = vadd.f32 0.0, %v1077
      %v1079 = vpop.f32.mrb[0].mxu0
      %1080 = vmatprep.mubr.bf16.mxu0 0
      %1081 = vmatmul.mubr.bf16.gmra.mrb[0].mxu0 %v698
      %v1082 = vpop.f32.mrb[0].mxu0
      %v1083 = vadd.f32 0.0, %v1082
      %v1084 = vpop.f32.mrb[0].mxu0
      %v1085 = vpop.f32.mrb[0].mxu0
      %v1086 = vadd.f32 0.0, %v1085
      %v1087 = vpop.f32.mrb[0].mxu0
      %1088 = vmatprep.mubr.bf16.mxu0 0
      %1089 = vmatmul.mubr.bf16.gmra.mrb[0].mxu0 %v701
      %v1090 = vpop.f32.mrb[0].mxu0
      %v1091 = vadd.f32 0.0, %v1090
      %v1092 = vpop.f32.mrb[0].mxu0
      %v1093 = vpop.f32.mrb[0].mxu0
      %v1094 = vadd.f32 0.0, %v1093
      %v1095 = vpop.f32.mrb[0].mxu0
      %1096 = vmatprep.mubr.bf16.mxu0 0
      %1097 = vmatmul.mubr.bf16.gmra.mrb[0].mxu0 %v704
      %v1098 = vpop.f32.mrb[0].mxu0
      %v1099 = vadd.f32 0.0, %v1098
      %v1100 = vpop.f32.mrb[0].mxu0
      %v1101 = vpop.f32.mrb[0].mxu0
      %v1102 = vadd.f32 0.0, %v1101
      %v1103 = vpop.f32.mrb[0].mxu0
      %1104 = vmatprep.mubr.bf16.mxu0 0
      %1105 = vmatmul.mubr.bf16.gmra.mrb[0].mxu0 %v707
      %v1106 = vpop.f32.mrb[0].mxu0
      %v1107 = vadd.f32 0.0, %v1106
      %v1108 = vpop.f32.mrb[0].mxu0
      %v1109 = vpop.f32.mrb[0].mxu0
      %v1110 = vadd.f32 0.0, %v1109
      %v1111 = vpop.f32.mrb[0].mxu0
      %1112 = vmatprep.mubr.bf16.mxu0 0
      %1113 = vmatmul.mubr.bf16.gmra.mrb[0].mxu0 %v710
      %v1114 = vpop.f32.mrb[0].mxu0
      %v1115 = vadd.f32 0.0, %v1114
      %v1116 = vpop.f32.mrb[0].mxu0
      %v1117 = vpop.f32.mrb[0].mxu0
      %v1118 = vadd.f32 0.0, %v1117
      %v1119 = vpop.f32.mrb[0].mxu0
      %1120 = vmatprep.mubr.bf16.mxu0 0
      %1121 = vmatmul.mubr.bf16.gmra.mrb[0].mxu0 %v713
      %v1122 = vpop.f32.mrb[0].mxu0
      %v1123 = vadd.f32 0.0, %v1122
      %v1124 = vpop.f32.mrb[0].mxu0
      %v1125 = vpop.f32.mrb[0].mxu0
      %v1126 = vadd.f32 0.0, %v1125
      %v1127 = vpop.f32.mrb[0].mxu0
      %1128 = vmatprep.mubr.bf16.mxu0 0
      %1129 = vmatmul.mubr.bf16.gmra.mrb[0].mxu0 %v716
      %v1130 = vpop.f32.mrb[0].mxu0
      %v1131 = vadd.f32 0.0, %v1130
      %v1132 = vpop.f32.mrb[0].mxu0
      %v1133 = vpop.f32.mrb[0].mxu0
      %v1134 = vadd.f32 0.0, %v1133
      %v1135 = vpop.f32.mrb[0].mxu0
      %1136 = vmatprep.mubr.bf16.mxu0 0
      %1137 = vmatmul.mubr.bf16.gmra.mrb[0].mxu0 %v719
      %v1138 = vpop.f32.mrb[0].mxu0
      %v1139 = vadd.f32 0.0, %v1138
      %v1140 = vpop.f32.mrb[0].mxu0
      %v1141 = vpop.f32.mrb[0].mxu0
      %v1142 = vadd.f32 0.0, %v1141
      %v1143 = vpop.f32.mrb[0].mxu0
      %1144 = vmatprep.mubr.bf16.mxu0 0
      %1145 = vmatmul.mubr.bf16.gmra.mrb[0].mxu0 %v722
      %v1146 = vpop.f32.mrb[0].mxu0
      %v1147 = vadd.f32 0.0, %v1146
      %v1148 = vpop.f32.mrb[0].mxu0
      %v1149 = vpop.f32.mrb[0].mxu0
      %v1150 = vadd.f32 0.0, %v1149
      %v1151 = vpop.f32.mrb[0].mxu0
      %1152 = vmatprep.mubr.bf16.mxu0 0
      %1153 = vmatmul.mubr.bf16.gmra.mrb[0].mxu0 %v725
      %v1154 = vpop.f32.mrb[0].mxu0
      %v1155 = vadd.f32 0.0, %v1154
      %v1156 = vpop.f32.mrb[0].mxu0
      %v1157 = vpop.f32.mrb[0].mxu0
      %v1158 = vadd.f32 0.0, %v1157
      %v1159 = vpop.f32.mrb[0].mxu0
      %1160 = vmatprep.mubr.bf16.mxu0 0
      %1161 = vmatmul.mubr.bf16.gmra.mrb[0].mxu0 %v728
      %v1162 = vpop.f32.mrb[0].mxu0
      %v1163 = vadd.f32 0.0, %v1162
      %v1164 = vpop.f32.mrb[0].mxu0
      %v1165 = vpop.f32.mrb[0].mxu0
      %v1166 = vadd.f32 0.0, %v1165
      %v1167 = vpop.f32.mrb[0].mxu0
      %1168 = vmatprep.mubr.bf16.mxu0 0
      %1169 = vmatmul.mubr.bf16.gmra.mrb[0].mxu0 %v731
      %v1170 = vpop.f32.mrb[0].mxu0
      %v1171 = vadd.f32 0.0, %v1170
      %v1172 = vpop.f32.mrb[0].mxu0
      %v1173 = vpop.f32.mrb[0].mxu0
      %v1174 = vadd.f32 0.0, %v1173
      %v1175 = vpop.f32.mrb[0].mxu0
      %1176 = vmatprep.mubr.bf16.mxu0 0
      %1177 = vmatmul.mubr.bf16.gmra.mrb[0].mxu0 %v734
      %v1178 = vpop.f32.mrb[0].mxu0
      %v1179 = vadd.f32 0.0, %v1178
      %v1180 = vpop.f32.mrb[0].mxu0
      %v1181 = vpop.f32.mrb[0].mxu0
      %v1182 = vadd.f32 0.0, %v1181
      %v1183 = vpop.f32.mrb[0].mxu0
      %1184 = vmatprep.mubr.bf16.mxu0 0
      %1185 = vmatmul.mubr.bf16.gmra.mrb[0].mxu0 %v737
      %v1186 = vpop.f32.mrb[0].mxu0
      %v1187 = vadd.f32 0.0, %v1186
      %v1188 = vpop.f32.mrb[0].mxu0
      %v1189 = vpop.f32.mrb[0].mxu0
      %v1190 = vadd.f32 0.0, %v1189
      %v1191 = vpop.f32.mrb[0].mxu0
      %1192 = vmatprep.mubr.bf16.mxu0 0
      %1193 = vmatmul.mubr.bf16.gmra.mrb[0].mxu0 %v740
      %v1194 = vpop.f32.mrb[0].mxu0
      %v1195 = vadd.f32 0.0, %v1194
      %v1196 = vpop.f32.mrb[0].mxu0
      %v1197 = vpop.f32.mrb[0].mxu0
      %v1198 = vadd.f32 0.0, %v1197
      %v1199 = vpop.f32.mrb[0].mxu0
      %1200 = vmatprep.mubr.bf16.mxu0 0
      %1201 = vmatmul.mubr.bf16.gmra.mrb[0].mxu0 %v743
      %v1202 = vpop.f32.mrb[0].mxu0
      %v1203 = vadd.f32 0.0, %v1202
      %v1204 = vpop.f32.mrb[0].mxu0
      %v1205 = vpop.f32.mrb[0].mxu0
      %v1206 = vadd.f32 0.0, %v1205
      %v1207 = vpop.f32.mrb[0].mxu0
      %1208 = vmatprep.mubr.bf16.mxu0 0
      %1209 = vmatmul.mubr.bf16.gmra.mrb[0].mxu0 %v746
      %v1210 = vpop.f32.mrb[0].mxu0
      %v1211 = vadd.f32 0.0, %v1210
      %v1212 = vpop.f32.mrb[0].mxu0
      %v1213 = vpop.f32.mrb[0].mxu0
      %v1214 = vadd.f32 0.0, %v1213
      %v1215 = vpop.f32.mrb[0].mxu0
      %1216 = vmatprep.mubr.bf16.mxu0 0
      %1217 = vmatmul.mubr.bf16.gmra.mrb[0].mxu0 %v749
      %v1218 = vpop.f32.mrb[0].mxu0
      %v1219 = vadd.f32 0.0, %v1218
      %v1220 = vpop.f32.mrb[0].mxu0
      %v1221 = vpop.f32.mrb[0].mxu0
      %v1222 = vadd.f32 0.0, %v1221
      %v1223 = vpop.f32.mrb[0].mxu0
      %1224 = vmatprep.mubr.bf16.mxu0 0
      %1225 = vmatmul.mubr.bf16.gmra.mrb[0].mxu0 %v752
      %v1226 = vpop.f32.mrb[0].mxu0
      %v1227 = vadd.f32 0.0, %v1226
      %v1228 = vpop.f32.mrb[0].mxu0
      %v1229 = vpop.f32.mrb[0].mxu0
      %v1230 = vadd.f32 0.0, %v1229
      %v1231 = vpop.f32.mrb[0].mxu0
      %1232 = vmatprep.mubr.bf16.mxu0 0
      %1233 = vmatmul.mubr.bf16.gmra.mrb[0].mxu0 %v755
      %v1234 = vpop.f32.mrb[0].mxu0
      %v1235 = vadd.f32 0.0, %v1234
      %v1236 = vpop.f32.mrb[0].mxu0
      %v1237 = vpop.f32.mrb[0].mxu0
      %v1238 = vadd.f32 0.0, %v1237
      %v1239 = vpop.f32.mrb[0].mxu0
      %1240 = vmatprep.mubr.bf16.mxu0 0
      %1241 = vmatmul.mubr.bf16.gmra.mrb[0].mxu0 %v758
      %v1242 = vpop.f32.mrb[0].mxu0
      %v1243 = vadd.f32 0.0, %v1242
      %v1244 = vpop.f32.mrb[0].mxu0
      %v1245 = vpop.f32.mrb[0].mxu0
      %v1246 = vadd.f32 0.0, %v1245
      %v1247 = vpop.f32.mrb[0].mxu0
      %1248 = vmatprep.mubr.bf16.mxu0 0
      %1249 = vmatmul.mubr.bf16.gmra.mrb[0].mxu0 %v761
      %v1250 = vpop.f32.mrb[0].mxu0
      %v1251 = vadd.f32 0.0, %v1250
      %v1252 = vpop.f32.mrb[0].mxu0
      %v1253 = vpop.f32.mrb[0].mxu0
      %v1254 = vadd.f32 0.0, %v1253
      %v1255 = vpop.f32.mrb[0].mxu0
      %1256 = vmatprep.mubr.bf16.mxu0 0
      %1257 = vmatmul.mubr.bf16.gmra.mrb[0].mxu0 %v764
      %v1258 = vpop.f32.mrb[0].mxu0
      %v1259 = vadd.f32 0.0, %v1258
      %v1260 = vpop.f32.mrb[0].mxu0
      %v1261 = vpop.f32.mrb[0].mxu0
      %v1262 = vadd.f32 0.0, %v1261
      %v1263 = vpop.f32.mrb[0].mxu0
      %1264 = vmatprep.mubr.bf16.mxu0 0
      %1265 = vmatmul.mubr.bf16.gmra.mrb[0].mxu0 %v767
      %v1266 = vpop.f32.mrb[0].mxu0
      %v1267 = vadd.f32 0.0, %v1266
      %v1268 = vpop.f32.mrb[0].mxu0
      %v1269 = vpop.f32.mrb[0].mxu0
      %v1270 = vadd.f32 0.0, %v1269
      %v1271 = vpop.f32.mrb[0].mxu0
      %1272 = vmatprep.mubr.bf16.mxu0 0
      %1273 = vmatmul.mubr.bf16.gmra.mrb[0].mxu0 %v770
      %v1274 = vpop.f32.mrb[0].mxu0
      %v1275 = vadd.f32 0.0, %v1274
      %v1276 = vpop.f32.mrb[0].mxu0
      %v1277 = vpop.f32.mrb[0].mxu0
      %v1278 = vadd.f32 0.0, %v1277
      %v1279 = vpop.f32.mrb[0].mxu0
      %1280 = vmatprep.mubr.bf16.mxu0 0
      %1281 = vmatmul.mubr.bf16.gmra.mrb[0].mxu0 %v773
      %v1282 = vpop.f32.mrb[0].mxu0
      %v1283 = vadd.f32 0.0, %v1282
      %v1284 = vpop.f32.mrb[0].mxu0
      %v1285 = vpop.f32.mrb[0].mxu0
      %v1286 = vadd.f32 0.0, %v1285
      %v1287 = vpop.f32.mrb[0].mxu0
      %1288 = vmatprep.mubr.bf16.mxu0 0
      %1289 = vmatmul.mubr.bf16.gmra.mrb[0].mxu0 %v776
      %v1290 = vpop.f32.mrb[0].mxu0
      %v1291 = vadd.f32 0.0, %v1290
      %v1292 = vpop.f32.mrb[0].mxu0
      %v1293 = vpop.f32.mrb[0].mxu0
      %v1294 = vadd.f32 0.0, %v1293
      %v1295 = vpop.f32.mrb[0].mxu0
      %1296 = vmatprep.mubr.bf16.mxu0 0
      %1297 = vmatmul.mubr.bf16.gmra.mrb[0].mxu0 %v779
      %v1298 = vpop.f32.mrb[0].mxu0
      %v1299 = vadd.f32 0.0, %v1298
      %v1300 = vpop.f32.mrb[0].mxu0
      %v1301 = vpop.f32.mrb[0].mxu0
      %v1302 = vadd.f32 0.0, %v1301
      %v1303 = vpop.f32.mrb[0].mxu0
      %1304 = vmatprep.mubr.bf16.mxu0 0
      %1305 = vmatmul.mubr.bf16.gmra.mrb[0].mxu0 %v782
      %v1306 = vpop.f32.mrb[0].mxu0
      %v1307 = vadd.f32 0.0, %v1306
      %v1308 = vpop.f32.mrb[0].mxu0
      %v1309 = vpop.f32.mrb[0].mxu0
      %v1310 = vadd.f32 0.0, %v1309
      %v1311 = vpop.f32.mrb[0].mxu0
      %1312 = vmatprep.mubr.bf16.mxu0 0
      %1313 = vmatmul.mubr.bf16.gmra.mrb[0].mxu0 %v785
      %v1314 = vpop.f32.mrb[0].mxu0
      %v1315 = vadd.f32 0.0, %v1314
      %v1316 = vpop.f32.mrb[0].mxu0
      %v1317 = vpop.f32.mrb[0].mxu0
      %v1318 = vadd.f32 0.0, %v1317
      %v1319 = vpop.f32.mrb[0].mxu0
      %1320 = vmatprep.mubr.bf16.mxu0 0
      %1321 = vmatmul.mubr.bf16.gmra.mrb[0].mxu0 %v788
      %v1322 = vpop.f32.mrb[0].mxu0
      %v1323 = vadd.f32 0.0, %v1322
      %v1324 = vpop.f32.mrb[0].mxu0
      %v1325 = vpop.f32.mrb[0].mxu0
      %v1326 = vadd.f32 0.0, %v1325
      %v1327 = vpop.f32.mrb[0].mxu0
      %1328 = vmatprep.mubr.bf16.mxu0 0
      %1329 = vmatmul.mubr.bf16.gmra.mrb[0].mxu0 %v791
      %v1330 = vpop.f32.mrb[0].mxu0
      %v1331 = vadd.f32 0.0, %v1330
      %v1332 = vpop.f32.mrb[0].mxu0
      %v1333 = vpop.f32.mrb[0].mxu0
      %v1334 = vadd.f32 0.0, %v1333
      %v1335 = vpop.f32.mrb[0].mxu0
      %1336 = vmatprep.mubr.bf16.mxu0 0
      %1337 = vmatmul.mubr.bf16.gmra.mrb[0].mxu0 %v794
      %v1338 = vpop.f32.mrb[0].mxu0
      %v1339 = vadd.f32 0.0, %v1338
      %v1340 = vpop.f32.mrb[0].mxu0
      %v1341 = vpop.f32.mrb[0].mxu0
      %v1342 = vadd.f32 0.0, %v1341
      %v1343 = vpop.f32.mrb[0].mxu0
      %1344 = vdwg.mxu0
      %v1345 = vmax.f32 %v835, 0.0
      %v1346 = vmax.f32 %v838, 0.0
      %v1347 = vmax.f32 %v843, 0.0
      %v1348 = vmax.f32 %v846, 0.0
      %v1349 = vmax.f32 %v851, 0.0
      %v1350 = vmax.f32 %v854, 0.0
      %v1351 = vmax.f32 %v859, 0.0
      %v1352 = vmax.f32 %v862, 0.0
      %v1353 = vmax.f32 %v867, 0.0
      %v1354 = vmax.f32 %v870, 0.0
      %v1355 = vmax.f32 %v875, 0.0
      %v1356 = vmax.f32 %v878, 0.0
      %v1357 = vmax.f32 %v883, 0.0
      %v1358 = vmax.f32 %v886, 0.0
      %v1359 = vmax.f32 %v891, 0.0
      %v1360 = vmax.f32 %v894, 0.0
      %v1361 = vmax.f32 %v899, 0.0
      %v1362 = vmax.f32 %v902, 0.0
      %v1363 = vmax.f32 %v907, 0.0
      %v1364 = vmax.f32 %v910, 0.0
      %v1365 = vmax.f32 %v915, 0.0
      %v1366 = vmax.f32 %v918, 0.0
      %v1367 = vmax.f32 %v923, 0.0
      %v1368 = vmax.f32 %v926, 0.0
      %v1369 = vmax.f32 %v931, 0.0
      %v1370 = vmax.f32 %v934, 0.0
      %v1371 = vmax.f32 %v939, 0.0
      %v1372 = vmax.f32 %v942, 0.0
      %v1373 = vmax.f32 %v947, 0.0
      %v1374 = vmax.f32 %v950, 0.0
      %v1375 = vmax.f32 %v955, 0.0
      %v1376 = vmax.f32 %v958, 0.0
      %v1377 = vmax.f32 %v963, 0.0
      %v1378 = vmax.f32 %v966, 0.0
      %v1379 = vmax.f32 %v971, 0.0
      %v1380 = vmax.f32 %v974, 0.0
      %v1381 = vmax.f32 %v979, 0.0
      %v1382 = vmax.f32 %v982, 0.0
      %v1383 = vmax.f32 %v987, 0.0
      %v1384 = vmax.f32 %v990, 0.0
      %v1385 = vmax.f32 %v995, 0.0
      %v1386 = vmax.f32 %v998, 0.0
      %v1387 = vmax.f32 %v1003, 0.0
      %v1388 = vmax.f32 %v1006, 0.0
      %v1389 = vmax.f32 %v1011, 0.0
      %v1390 = vmax.f32 %v1014, 0.0
      %v1391 = vmax.f32 %v1019, 0.0
      %v1392 = vmax.f32 %v1022, 0.0
      %v1393 = vmax.f32 %v1027, 0.0
      %v1394 = vmax.f32 %v1030, 0.0
      %v1395 = vmax.f32 %v1035, 0.0
      %v1396 = vmax.f32 %v1038, 0.0
      %v1397 = vmax.f32 %v1043, 0.0
      %v1398 = vmax.f32 %v1046, 0.0
      %v1399 = vmax.f32 %v1051, 0.0
      %v1400 = vmax.f32 %v1054, 0.0
      %v1401 = vmax.f32 %v1059, 0.0
      %v1402 = vmax.f32 %v1062, 0.0
      %v1403 = vmax.f32 %v1067, 0.0
      %v1404 = vmax.f32 %v1070, 0.0
      %v1405 = vmax.f32 %v1075, 0.0
      %v1406 = vmax.f32 %v1078, 0.0
      %v1407 = vmax.f32 %v1083, 0.0
      %v1408 = vmax.f32 %v1086, 0.0
      %v1409 = vmax.f32 %v1091, 0.0
      %v1410 = vmax.f32 %v1094, 0.0
      %v1411 = vmax.f32 %v1099, 0.0
      %v1412 = vmax.f32 %v1102, 0.0
      %v1413 = vmax.f32 %v1107, 0.0
      %v1414 = vmax.f32 %v1110, 0.0
      %v1415 = vmax.f32 %v1115, 0.0
      %v1416 = vmax.f32 %v1118, 0.0
      %v1417 = vmax.f32 %v1123, 0.0
      %v1418 = vmax.f32 %v1126, 0.0
      %v1419 = vmax.f32 %v1131, 0.0
      %v1420 = vmax.f32 %v1134, 0.0
      %v1421 = vmax.f32 %v1139, 0.0
      %v1422 = vmax.f32 %v1142, 0.0
      %v1423 = vmax.f32 %v1147, 0.0
      %v1424 = vmax.f32 %v1150, 0.0
      %v1425 = vmax.f32 %v1155, 0.0
      %v1426 = vmax.f32 %v1158, 0.0
      %v1427 = vmax.f32 %v1163, 0.0
      %v1428 = vmax.f32 %v1166, 0.0
      %v1429 = vmax.f32 %v1171, 0.0
      %v1430 = vmax.f32 %v1174, 0.0
      %v1431 = vmax.f32 %v1179, 0.0
      %v1432 = vmax.f32 %v1182, 0.0
      %v1433 = vmax.f32 %v1187, 0.0
      %v1434 = vmax.f32 %v1190, 0.0
      %v1435 = vmax.f32 %v1195, 0.0
      %v1436 = vmax.f32 %v1198, 0.0
      %v1437 = vmax.f32 %v1203, 0.0
      %v1438 = vmax.f32 %v1206, 0.0
      %v1439 = vmax.f32 %v1211, 0.0
      %v1440 = vmax.f32 %v1214, 0.0
      %v1441 = vmax.f32 %v1219, 0.0
      %v1442 = vmax.f32 %v1222, 0.0
      %v1443 = vmax.f32 %v1227, 0.0
      %v1444 = vmax.f32 %v1230, 0.0
      %v1445 = vmax.f32 %v1235, 0.0
      %v1446 = vmax.f32 %v1238, 0.0
      %v1447 = vmax.f32 %v1243, 0.0
      %v1448 = vmax.f32 %v1246, 0.0
      %v1449 = vmax.f32 %v1251, 0.0
      %v1450 = vmax.f32 %v1254, 0.0
      %v1451 = vmax.f32 %v1259, 0.0
      %v1452 = vmax.f32 %v1262, 0.0
      %v1453 = vmax.f32 %v1267, 0.0
      %v1454 = vmax.f32 %v1270, 0.0
      %v1455 = vmax.f32 %v1275, 0.0
      %v1456 = vmax.f32 %v1278, 0.0
      %v1457 = vmax.f32 %v1283, 0.0
      %v1458 = vmax.f32 %v1286, 0.0
      %v1459 = vmax.f32 %v1291, 0.0
      %v1460 = vmax.f32 %v1294, 0.0
      %v1461 = vmax.f32 %v1299, 0.0
      %v1462 = vmax.f32 %v1302, 0.0
      %v1463 = vmax.f32 %v1307, 0.0
      %v1464 = vmax.f32 %v1310, 0.0
      %v1465 = vmax.f32 %v1315, 0.0
      %v1466 = vmax.f32 %v1318, 0.0
      %v1467 = vmax.f32 %v1323, 0.0
      %v1468 = vmax.f32 %v1326, 0.0
      %v1469 = vmax.f32 %v1331, 0.0
      %v1470 = vmax.f32 %v1334, 0.0
      %v1471 = vmax.f32 %v1339, 0.0
      %v1472 = vmax.f32 %v1342, 0.0
      %vm1473 = vcmask 523264
      %v1474 = vsel %vm1473, %v1345, -inf
      %v1475 = vrot.slane %v1474, 4
      %v1476 = vmax.f32 %v1474, %v1475
      %v1477 = vrot.slane %v1476, 2
      %v1478 = vmax.f32 %v1476, %v1477
      %v1479 = vrot.slane %v1478, 1
      %v1480 = vmax.f32 %v1478, %v1479
      %v1481 = vsel %vm1473, %v1346, -inf
      %v1482 = vrot.slane %v1481, 4
      %v1483 = vmax.f32 %v1481, %v1482
      %v1484 = vrot.slane %v1483, 2
      %v1485 = vmax.f32 %v1483, %v1484
      %v1486 = vrot.slane %v1485, 1
      %v1487 = vmax.f32 %v1485, %v1486
      %v1488 = vsel %vm1473, %v1347, -inf
      %v1489 = vrot.slane %v1488, 4
      %v1490 = vmax.f32 %v1488, %v1489
      %v1491 = vrot.slane %v1490, 2
      %v1492 = vmax.f32 %v1490, %v1491
      %v1493 = vrot.slane %v1492, 1
      %v1494 = vmax.f32 %v1492, %v1493
      %v1495 = vsel %vm1473, %v1348, -inf
      %v1496 = vrot.slane %v1495, 4
      %v1497 = vmax.f32 %v1495, %v1496
      %v1498 = vrot.slane %v1497, 2
      %v1499 = vmax.f32 %v1497, %v1498
      %v1500 = vrot.slane %v1499, 1
      %v1501 = vmax.f32 %v1499, %v1500
      %v1502 = vsel %vm1473, %v1349, -inf
      %v1503 = vrot.slane %v1502, 4
      %v1504 = vmax.f32 %v1502, %v1503
      %v1505 = vrot.slane %v1504, 2
      %v1506 = vmax.f32 %v1504, %v1505
      %v1507 = vrot.slane %v1506, 1
      %v1508 = vmax.f32 %v1506, %v1507
      %v1509 = vsel %vm1473, %v1350, -inf
      %v1510 = vrot.slane %v1509, 4
      %v1511 = vmax.f32 %v1509, %v1510
      %v1512 = vrot.slane %v1511, 2
      %v1513 = vmax.f32 %v1511, %v1512
      %v1514 = vrot.slane %v1513, 1
      %v1515 = vmax.f32 %v1513, %v1514
      %v1516 = vsel %vm1473, %v1351, -inf
      %v1517 = vrot.slane %v1516, 4
      %v1518 = vmax.f32 %v1516, %v1517
      %v1519 = vrot.slane %v1518, 2
      %v1520 = vmax.f32 %v1518, %v1519
      %v1521 = vrot.slane %v1520, 1
      %v1522 = vmax.f32 %v1520, %v1521
      %v1523 = vsel %vm1473, %v1352, -inf
      %v1524 = vrot.slane %v1523, 4
      %v1525 = vmax.f32 %v1523, %v1524
      %v1526 = vrot.slane %v1525, 2
      %v1527 = vmax.f32 %v1525, %v1526
      %v1528 = vrot.slane %v1527, 1
      %v1529 = vmax.f32 %v1527, %v1528
      %v1530 = vsel %vm1473, %v1353, -inf
      %v1531 = vrot.slane %v1530, 4
      %v1532 = vmax.f32 %v1530, %v1531
      %v1533 = vrot.slane %v1532, 2
      %v1534 = vmax.f32 %v1532, %v1533
      %v1535 = vrot.slane %v1534, 1
      %v1536 = vmax.f32 %v1534, %v1535
      %v1537 = vsel %vm1473, %v1354, -inf
      %v1538 = vrot.slane %v1537, 4
      %v1539 = vmax.f32 %v1537, %v1538
      %v1540 = vrot.slane %v1539, 2
      %v1541 = vmax.f32 %v1539, %v1540
      %v1542 = vrot.slane %v1541, 1
      %v1543 = vmax.f32 %v1541, %v1542
      %v1544 = vsel %vm1473, %v1355, -inf
      %v1545 = vrot.slane %v1544, 4
      %v1546 = vmax.f32 %v1544, %v1545
      %v1547 = vrot.slane %v1546, 2
      %v1548 = vmax.f32 %v1546, %v1547
      %v1549 = vrot.slane %v1548, 1
      %v1550 = vmax.f32 %v1548, %v1549
      %v1551 = vsel %vm1473, %v1356, -inf
      %v1552 = vrot.slane %v1551, 4
      %v1553 = vmax.f32 %v1551, %v1552
      %v1554 = vrot.slane %v1553, 2
      %v1555 = vmax.f32 %v1553, %v1554
      %v1556 = vrot.slane %v1555, 1
      %v1557 = vmax.f32 %v1555, %v1556
      %v1558 = vsel %vm1473, %v1357, -inf
      %v1559 = vrot.slane %v1558, 4
      %v1560 = vmax.f32 %v1558, %v1559
      %v1561 = vrot.slane %v1560, 2
      %v1562 = vmax.f32 %v1560, %v1561
      %v1563 = vrot.slane %v1562, 1
      %v1564 = vmax.f32 %v1562, %v1563
      %v1565 = vsel %vm1473, %v1358, -inf
      %v1566 = vrot.slane %v1565, 4
      %v1567 = vmax.f32 %v1565, %v1566
      %v1568 = vrot.slane %v1567, 2
      %v1569 = vmax.f32 %v1567, %v1568
      %v1570 = vrot.slane %v1569, 1
      %v1571 = vmax.f32 %v1569, %v1570
      %v1572 = vsel %vm1473, %v1359, -inf
      %v1573 = vrot.slane %v1572, 4
      %v1574 = vmax.f32 %v1572, %v1573
      %v1575 = vrot.slane %v1574, 2
      %v1576 = vmax.f32 %v1574, %v1575
      %v1577 = vrot.slane %v1576, 1
      %v1578 = vmax.f32 %v1576, %v1577
      %v1579 = vsel %vm1473, %v1360, -inf
      %v1580 = vrot.slane %v1579, 4
      %v1581 = vmax.f32 %v1579, %v1580
      %v1582 = vrot.slane %v1581, 2
      %v1583 = vmax.f32 %v1581, %v1582
      %v1584 = vrot.slane %v1583, 1
      %v1585 = vmax.f32 %v1583, %v1584
      %v1586 = vsel %vm1473, %v1361, -inf
      %v1587 = vrot.slane %v1586, 4
      %v1588 = vmax.f32 %v1586, %v1587
      %v1589 = vrot.slane %v1588, 2
      %v1590 = vmax.f32 %v1588, %v1589
      %v1591 = vrot.slane %v1590, 1
      %v1592 = vmax.f32 %v1590, %v1591
      %v1593 = vsel %vm1473, %v1362, -inf
      %v1594 = vrot.slane %v1593, 4
      %v1595 = vmax.f32 %v1593, %v1594
      %v1596 = vrot.slane %v1595, 2
      %v1597 = vmax.f32 %v1595, %v1596
      %v1598 = vrot.slane %v1597, 1
      %v1599 = vmax.f32 %v1597, %v1598
      %v1600 = vsel %vm1473, %v1363, -inf
      %v1601 = vrot.slane %v1600, 4
      %v1602 = vmax.f32 %v1600, %v1601
      %v1603 = vrot.slane %v1602, 2
      %v1604 = vmax.f32 %v1602, %v1603
      %v1605 = vrot.slane %v1604, 1
      %v1606 = vmax.f32 %v1604, %v1605
      %v1607 = vsel %vm1473, %v1364, -inf
      %v1608 = vrot.slane %v1607, 4
      %v1609 = vmax.f32 %v1607, %v1608
      %v1610 = vrot.slane %v1609, 2
      %v1611 = vmax.f32 %v1609, %v1610
      %v1612 = vrot.slane %v1611, 1
      %v1613 = vmax.f32 %v1611, %v1612
      %v1614 = vsel %vm1473, %v1365, -inf
      %v1615 = vrot.slane %v1614, 4
      %v1616 = vmax.f32 %v1614, %v1615
      %v1617 = vrot.slane %v1616, 2
      %v1618 = vmax.f32 %v1616, %v1617
      %v1619 = vrot.slane %v1618, 1
      %v1620 = vmax.f32 %v1618, %v1619
      %v1621 = vsel %vm1473, %v1366, -inf
      %v1622 = vrot.slane %v1621, 4
      %v1623 = vmax.f32 %v1621, %v1622
      %v1624 = vrot.slane %v1623, 2
      %v1625 = vmax.f32 %v1623, %v1624
      %v1626 = vrot.slane %v1625, 1
      %v1627 = vmax.f32 %v1625, %v1626
      %v1628 = vsel %vm1473, %v1367, -inf
      %v1629 = vrot.slane %v1628, 4
      %v1630 = vmax.f32 %v1628, %v1629
      %v1631 = vrot.slane %v1630, 2
      %v1632 = vmax.f32 %v1630, %v1631
      %v1633 = vrot.slane %v1632, 1
      %v1634 = vmax.f32 %v1632, %v1633
      %v1635 = vsel %vm1473, %v1368, -inf
      %v1636 = vrot.slane %v1635, 4
      %v1637 = vmax.f32 %v1635, %v1636
      %v1638 = vrot.slane %v1637, 2
      %v1639 = vmax.f32 %v1637, %v1638
      %v1640 = vrot.slane %v1639, 1
      %v1641 = vmax.f32 %v1639, %v1640
      %v1642 = vsel %vm1473, %v1369, -inf
      %v1643 = vrot.slane %v1642, 4
      %v1644 = vmax.f32 %v1642, %v1643
      %v1645 = vrot.slane %v1644, 2
      %v1646 = vmax.f32 %v1644, %v1645
      %v1647 = vrot.slane %v1646, 1
      %v1648 = vmax.f32 %v1646, %v1647
      %v1649 = vsel %vm1473, %v1370, -inf
      %v1650 = vrot.slane %v1649, 4
      %v1651 = vmax.f32 %v1649, %v1650
      %v1652 = vrot.slane %v1651, 2
      %v1653 = vmax.f32 %v1651, %v1652
      %v1654 = vrot.slane %v1653, 1
      %v1655 = vmax.f32 %v1653, %v1654
      %v1656 = vsel %vm1473, %v1371, -inf
      %v1657 = vrot.slane %v1656, 4
      %v1658 = vmax.f32 %v1656, %v1657
      %v1659 = vrot.slane %v1658, 2
      %v1660 = vmax.f32 %v1658, %v1659
      %v1661 = vrot.slane %v1660, 1
      %v1662 = vmax.f32 %v1660, %v1661
      %v1663 = vsel %vm1473, %v1372, -inf
      %v1664 = vrot.slane %v1663, 4
      %v1665 = vmax.f32 %v1663, %v1664
      %v1666 = vrot.slane %v1665, 2
      %v1667 = vmax.f32 %v1665, %v1666
      %v1668 = vrot.slane %v1667, 1
      %v1669 = vmax.f32 %v1667, %v1668
      %v1670 = vsel %vm1473, %v1373, -inf
      %v1671 = vrot.slane %v1670, 4
      %v1672 = vmax.f32 %v1670, %v1671
      %v1673 = vrot.slane %v1672, 2
      %v1674 = vmax.f32 %v1672, %v1673
      %v1675 = vrot.slane %v1674, 1
      %v1676 = vmax.f32 %v1674, %v1675
      %v1677 = vsel %vm1473, %v1374, -inf
      %v1678 = vrot.slane %v1677, 4
      %v1679 = vmax.f32 %v1677, %v1678
      %v1680 = vrot.slane %v1679, 2
      %v1681 = vmax.f32 %v1679, %v1680
      %v1682 = vrot.slane %v1681, 1
      %v1683 = vmax.f32 %v1681, %v1682
      %v1684 = vsel %vm1473, %v1375, -inf
      %v1685 = vrot.slane %v1684, 4
      %v1686 = vmax.f32 %v1684, %v1685
      %v1687 = vrot.slane %v1686, 2
      %v1688 = vmax.f32 %v1686, %v1687
      %v1689 = vrot.slane %v1688, 1
      %v1690 = vmax.f32 %v1688, %v1689
      %v1691 = vsel %vm1473, %v1376, -inf
      %v1692 = vrot.slane %v1691, 4
      %v1693 = vmax.f32 %v1691, %v1692
      %v1694 = vrot.slane %v1693, 2
      %v1695 = vmax.f32 %v1693, %v1694
      %v1696 = vrot.slane %v1695, 1
      %v1697 = vmax.f32 %v1695, %v1696
      %v1698 = vsel %vm1473, %v1377, -inf
      %v1699 = vrot.slane %v1698, 4
      %v1700 = vmax.f32 %v1698, %v1699
      %v1701 = vrot.slane %v1700, 2
      %v1702 = vmax.f32 %v1700, %v1701
      %v1703 = vrot.slane %v1702, 1
      %v1704 = vmax.f32 %v1702, %v1703
      %v1705 = vsel %vm1473, %v1378, -inf
      %v1706 = vrot.slane %v1705, 4
      %v1707 = vmax.f32 %v1705, %v1706
      %v1708 = vrot.slane %v1707, 2
      %v1709 = vmax.f32 %v1707, %v1708
      %v1710 = vrot.slane %v1709, 1
      %v1711 = vmax.f32 %v1709, %v1710
      %v1712 = vsel %vm1473, %v1379, -inf
      %v1713 = vrot.slane %v1712, 4
      %v1714 = vmax.f32 %v1712, %v1713
      %v1715 = vrot.slane %v1714, 2
      %v1716 = vmax.f32 %v1714, %v1715
      %v1717 = vrot.slane %v1716, 1
      %v1718 = vmax.f32 %v1716, %v1717
      %v1719 = vsel %vm1473, %v1380, -inf
      %v1720 = vrot.slane %v1719, 4
      %v1721 = vmax.f32 %v1719, %v1720
      %v1722 = vrot.slane %v1721, 2
      %v1723 = vmax.f32 %v1721, %v1722
      %v1724 = vrot.slane %v1723, 1
      %v1725 = vmax.f32 %v1723, %v1724
      %v1726 = vsel %vm1473, %v1381, -inf
      %v1727 = vrot.slane %v1726, 4
      %v1728 = vmax.f32 %v1726, %v1727
      %v1729 = vrot.slane %v1728, 2
      %v1730 = vmax.f32 %v1728, %v1729
      %v1731 = vrot.slane %v1730, 1
      %v1732 = vmax.f32 %v1730, %v1731
      %v1733 = vsel %vm1473, %v1382, -inf
      %v1734 = vrot.slane %v1733, 4
      %v1735 = vmax.f32 %v1733, %v1734
      %v1736 = vrot.slane %v1735, 2
      %v1737 = vmax.f32 %v1735, %v1736
      %v1738 = vrot.slane %v1737, 1
      %v1739 = vmax.f32 %v1737, %v1738
      %v1740 = vsel %vm1473, %v1383, -inf
      %v1741 = vrot.slane %v1740, 4
      %v1742 = vmax.f32 %v1740, %v1741
      %v1743 = vrot.slane %v1742, 2
      %v1744 = vmax.f32 %v1742, %v1743
      %v1745 = vrot.slane %v1744, 1
      %v1746 = vmax.f32 %v1744, %v1745
      %v1747 = vsel %vm1473, %v1384, -inf
      %v1748 = vrot.slane %v1747, 4
      %v1749 = vmax.f32 %v1747, %v1748
      %v1750 = vrot.slane %v1749, 2
      %v1751 = vmax.f32 %v1749, %v1750
      %v1752 = vrot.slane %v1751, 1
      %v1753 = vmax.f32 %v1751, %v1752
      %v1754 = vsel %vm1473, %v1385, -inf
      %v1755 = vrot.slane %v1754, 4
      %v1756 = vmax.f32 %v1754, %v1755
      %v1757 = vrot.slane %v1756, 2
      %v1758 = vmax.f32 %v1756, %v1757
      %v1759 = vrot.slane %v1758, 1
      %v1760 = vmax.f32 %v1758, %v1759
      %v1761 = vsel %vm1473, %v1386, -inf
      %v1762 = vrot.slane %v1761, 4
      %v1763 = vmax.f32 %v1761, %v1762
      %v1764 = vrot.slane %v1763, 2
      %v1765 = vmax.f32 %v1763, %v1764
      %v1766 = vrot.slane %v1765, 1
      %v1767 = vmax.f32 %v1765, %v1766
      %v1768 = vsel %vm1473, %v1387, -inf
      %v1769 = vrot.slane %v1768, 4
      %v1770 = vmax.f32 %v1768, %v1769
      %v1771 = vrot.slane %v1770, 2
      %v1772 = vmax.f32 %v1770, %v1771
      %v1773 = vrot.slane %v1772, 1
      %v1774 = vmax.f32 %v1772, %v1773
      %v1775 = vsel %vm1473, %v1388, -inf
      %v1776 = vrot.slane %v1775, 4
      %v1777 = vmax.f32 %v1775, %v1776
      %v1778 = vrot.slane %v1777, 2
      %v1779 = vmax.f32 %v1777, %v1778
      %v1780 = vrot.slane %v1779, 1
      %v1781 = vmax.f32 %v1779, %v1780
      %v1782 = vsel %vm1473, %v1389, -inf
      %v1783 = vrot.slane %v1782, 4
      %v1784 = vmax.f32 %v1782, %v1783
      %v1785 = vrot.slane %v1784, 2
      %v1786 = vmax.f32 %v1784, %v1785
      %v1787 = vrot.slane %v1786, 1
      %v1788 = vmax.f32 %v1786, %v1787
      %v1789 = vsel %vm1473, %v1390, -inf
      %v1790 = vrot.slane %v1789, 4
      %v1791 = vmax.f32 %v1789, %v1790
      %v1792 = vrot.slane %v1791, 2
      %v1793 = vmax.f32 %v1791, %v1792
      %v1794 = vrot.slane %v1793, 1
      %v1795 = vmax.f32 %v1793, %v1794
      %v1796 = vsel %vm1473, %v1391, -inf
      %v1797 = vrot.slane %v1796, 4
      %v1798 = vmax.f32 %v1796, %v1797
      %v1799 = vrot.slane %v1798, 2
      %v1800 = vmax.f32 %v1798, %v1799
      %v1801 = vrot.slane %v1800, 1
      %v1802 = vmax.f32 %v1800, %v1801
      %v1803 = vsel %vm1473, %v1392, -inf
      %v1804 = vrot.slane %v1803, 4
      %v1805 = vmax.f32 %v1803, %v1804
      %v1806 = vrot.slane %v1805, 2
      %v1807 = vmax.f32 %v1805, %v1806
      %v1808 = vrot.slane %v1807, 1
      %v1809 = vmax.f32 %v1807, %v1808
      %v1810 = vsel %vm1473, %v1393, -inf
      %v1811 = vrot.slane %v1810, 4
      %v1812 = vmax.f32 %v1810, %v1811
      %v1813 = vrot.slane %v1812, 2
      %v1814 = vmax.f32 %v1812, %v1813
      %v1815 = vrot.slane %v1814, 1
      %v1816 = vmax.f32 %v1814, %v1815
      %v1817 = vsel %vm1473, %v1394, -inf
      %v1818 = vrot.slane %v1817, 4
      %v1819 = vmax.f32 %v1817, %v1818
      %v1820 = vrot.slane %v1819, 2
      %v1821 = vmax.f32 %v1819, %v1820
      %v1822 = vrot.slane %v1821, 1
      %v1823 = vmax.f32 %v1821, %v1822
      %v1824 = vsel %vm1473, %v1395, -inf
      %v1825 = vrot.slane %v1824, 4
      %v1826 = vmax.f32 %v1824, %v1825
      %v1827 = vrot.slane %v1826, 2
      %v1828 = vmax.f32 %v1826, %v1827
      %v1829 = vrot.slane %v1828, 1
      %v1830 = vmax.f32 %v1828, %v1829
      %v1831 = vsel %vm1473, %v1396, -inf
      %v1832 = vrot.slane %v1831, 4
      %v1833 = vmax.f32 %v1831, %v1832
      %v1834 = vrot.slane %v1833, 2
      %v1835 = vmax.f32 %v1833, %v1834
      %v1836 = vrot.slane %v1835, 1
      %v1837 = vmax.f32 %v1835, %v1836
      %v1838 = vsel %vm1473, %v1397, -inf
      %v1839 = vrot.slane %v1838, 4
      %v1840 = vmax.f32 %v1838, %v1839
      %v1841 = vrot.slane %v1840, 2
      %v1842 = vmax.f32 %v1840, %v1841
      %v1843 = vrot.slane %v1842, 1
      %v1844 = vmax.f32 %v1842, %v1843
      %v1845 = vsel %vm1473, %v1398, -inf
      %v1846 = vrot.slane %v1845, 4
      %v1847 = vmax.f32 %v1845, %v1846
      %v1848 = vrot.slane %v1847, 2
      %v1849 = vmax.f32 %v1847, %v1848
      %v1850 = vrot.slane %v1849, 1
      %v1851 = vmax.f32 %v1849, %v1850
      %v1852 = vsel %vm1473, %v1399, -inf
      %v1853 = vrot.slane %v1852, 4
      %v1854 = vmax.f32 %v1852, %v1853
      %v1855 = vrot.slane %v1854, 2
      %v1856 = vmax.f32 %v1854, %v1855
      %v1857 = vrot.slane %v1856, 1
      %v1858 = vmax.f32 %v1856, %v1857
      %v1859 = vsel %vm1473, %v1400, -inf
      %v1860 = vrot.slane %v1859, 4
      %v1861 = vmax.f32 %v1859, %v1860
      %v1862 = vrot.slane %v1861, 2
      %v1863 = vmax.f32 %v1861, %v1862
      %v1864 = vrot.slane %v1863, 1
      %v1865 = vmax.f32 %v1863, %v1864
      %v1866 = vsel %vm1473, %v1401, -inf
      %v1867 = vrot.slane %v1866, 4
      %v1868 = vmax.f32 %v1866, %v1867
      %v1869 = vrot.slane %v1868, 2
      %v1870 = vmax.f32 %v1868, %v1869
      %v1871 = vrot.slane %v1870, 1
      %v1872 = vmax.f32 %v1870, %v1871
      %v1873 = vsel %vm1473, %v1402, -inf
      %v1874 = vrot.slane %v1873, 4
      %v1875 = vmax.f32 %v1873, %v1874
      %v1876 = vrot.slane %v1875, 2
      %v1877 = vmax.f32 %v1875, %v1876
      %v1878 = vrot.slane %v1877, 1
      %v1879 = vmax.f32 %v1877, %v1878
      %v1880 = vsel %vm1473, %v1403, -inf
      %v1881 = vrot.slane %v1880, 4
      %v1882 = vmax.f32 %v1880, %v1881
      %v1883 = vrot.slane %v1882, 2
      %v1884 = vmax.f32 %v1882, %v1883
      %v1885 = vrot.slane %v1884, 1
      %v1886 = vmax.f32 %v1884, %v1885
      %v1887 = vsel %vm1473, %v1404, -inf
      %v1888 = vrot.slane %v1887, 4
      %v1889 = vmax.f32 %v1887, %v1888
      %v1890 = vrot.slane %v1889, 2
      %v1891 = vmax.f32 %v1889, %v1890
      %v1892 = vrot.slane %v1891, 1
      %v1893 = vmax.f32 %v1891, %v1892
      %v1894 = vsel %vm1473, %v1405, -inf
      %v1895 = vrot.slane %v1894, 4
      %v1896 = vmax.f32 %v1894, %v1895
      %v1897 = vrot.slane %v1896, 2
      %v1898 = vmax.f32 %v1896, %v1897
      %v1899 = vrot.slane %v1898, 1
      %v1900 = vmax.f32 %v1898, %v1899
      %v1901 = vsel %vm1473, %v1406, -inf
      %v1902 = vrot.slane %v1901, 4
      %v1903 = vmax.f32 %v1901, %v1902
      %v1904 = vrot.slane %v1903, 2
      %v1905 = vmax.f32 %v1903, %v1904
      %v1906 = vrot.slane %v1905, 1
      %v1907 = vmax.f32 %v1905, %v1906
      %v1908 = vsel %vm1473, %v1407, -inf
      %v1909 = vrot.slane %v1908, 4
      %v1910 = vmax.f32 %v1908, %v1909
      %v1911 = vrot.slane %v1910, 2
      %v1912 = vmax.f32 %v1910, %v1911
      %v1913 = vrot.slane %v1912, 1
      %v1914 = vmax.f32 %v1912, %v1913
      %v1915 = vsel %vm1473, %v1408, -inf
      %v1916 = vrot.slane %v1915, 4
      %v1917 = vmax.f32 %v1915, %v1916
      %v1918 = vrot.slane %v1917, 2
      %v1919 = vmax.f32 %v1917, %v1918
      %v1920 = vrot.slane %v1919, 1
      %v1921 = vmax.f32 %v1919, %v1920
      %v1922 = vsel %vm1473, %v1409, -inf
      %v1923 = vrot.slane %v1922, 4
      %v1924 = vmax.f32 %v1922, %v1923
      %v1925 = vrot.slane %v1924, 2
      %v1926 = vmax.f32 %v1924, %v1925
      %v1927 = vrot.slane %v1926, 1
      %v1928 = vmax.f32 %v1926, %v1927
      %v1929 = vsel %vm1473, %v1410, -inf
      %v1930 = vrot.slane %v1929, 4
      %v1931 = vmax.f32 %v1929, %v1930
      %v1932 = vrot.slane %v1931, 2
      %v1933 = vmax.f32 %v1931, %v1932
      %v1934 = vrot.slane %v1933, 1
      %v1935 = vmax.f32 %v1933, %v1934
      %v1936 = vsel %vm1473, %v1411, -inf
      %v1937 = vrot.slane %v1936, 4
      %v1938 = vmax.f32 %v1936, %v1937
      %v1939 = vrot.slane %v1938, 2
      %v1940 = vmax.f32 %v1938, %v1939
      %v1941 = vrot.slane %v1940, 1
      %v1942 = vmax.f32 %v1940, %v1941
      %v1943 = vsel %vm1473, %v1412, -inf
      %v1944 = vrot.slane %v1943, 4
      %v1945 = vmax.f32 %v1943, %v1944
      %v1946 = vrot.slane %v1945, 2
      %v1947 = vmax.f32 %v1945, %v1946
      %v1948 = vrot.slane %v1947, 1
      %v1949 = vmax.f32 %v1947, %v1948
      %v1950 = vsel %vm1473, %v1413, -inf
      %v1951 = vrot.slane %v1950, 4
      %v1952 = vmax.f32 %v1950, %v1951
      %v1953 = vrot.slane %v1952, 2
      %v1954 = vmax.f32 %v1952, %v1953
      %v1955 = vrot.slane %v1954, 1
      %v1956 = vmax.f32 %v1954, %v1955
      %v1957 = vsel %vm1473, %v1414, -inf
      %v1958 = vrot.slane %v1957, 4
      %v1959 = vmax.f32 %v1957, %v1958
      %v1960 = vrot.slane %v1959, 2
      %v1961 = vmax.f32 %v1959, %v1960
      %v1962 = vrot.slane %v1961, 1
      %v1963 = vmax.f32 %v1961, %v1962
      %v1964 = vsel %vm1473, %v1415, -inf
      %v1965 = vrot.slane %v1964, 4
      %v1966 = vmax.f32 %v1964, %v1965
      %v1967 = vrot.slane %v1966, 2
      %v1968 = vmax.f32 %v1966, %v1967
      %v1969 = vrot.slane %v1968, 1
      %v1970 = vmax.f32 %v1968, %v1969
      %v1971 = vsel %vm1473, %v1416, -inf
      %v1972 = vrot.slane %v1971, 4
      %v1973 = vmax.f32 %v1971, %v1972
      %v1974 = vrot.slane %v1973, 2
      %v1975 = vmax.f32 %v1973, %v1974
      %v1976 = vrot.slane %v1975, 1
      %v1977 = vmax.f32 %v1975, %v1976
      %v1978 = vsel %vm1473, %v1417, -inf
      %v1979 = vrot.slane %v1978, 4
      %v1980 = vmax.f32 %v1978, %v1979
      %v1981 = vrot.slane %v1980, 2
      %v1982 = vmax.f32 %v1980, %v1981
      %v1983 = vrot.slane %v1982, 1
      %v1984 = vmax.f32 %v1982, %v1983
      %v1985 = vsel %vm1473, %v1418, -inf
      %v1986 = vrot.slane %v1985, 4
      %v1987 = vmax.f32 %v1985, %v1986
      %v1988 = vrot.slane %v1987, 2
      %v1989 = vmax.f32 %v1987, %v1988
      %v1990 = vrot.slane %v1989, 1
      %v1991 = vmax.f32 %v1989, %v1990
      %v1992 = vsel %vm1473, %v1419, -inf
      %v1993 = vrot.slane %v1992, 4
      %v1994 = vmax.f32 %v1992, %v1993
      %v1995 = vrot.slane %v1994, 2
      %v1996 = vmax.f32 %v1994, %v1995
      %v1997 = vrot.slane %v1996, 1
      %v1998 = vmax.f32 %v1996, %v1997
      %v1999 = vsel %vm1473, %v1420, -inf
      %v2000 = vrot.slane %v1999, 4
      %v2001 = vmax.f32 %v1999, %v2000
      %v2002 = vrot.slane %v2001, 2
      %v2003 = vmax.f32 %v2001, %v2002
      %v2004 = vrot.slane %v2003, 1
      %v2005 = vmax.f32 %v2003, %v2004
      %v2006 = vsel %vm1473, %v1421, -inf
      %v2007 = vrot.slane %v2006, 4
      %v2008 = vmax.f32 %v2006, %v2007
      %v2009 = vrot.slane %v2008, 2
      %v2010 = vmax.f32 %v2008, %v2009
      %v2011 = vrot.slane %v2010, 1
      %v2012 = vmax.f32 %v2010, %v2011
      %v2013 = vsel %vm1473, %v1422, -inf
      %v2014 = vrot.slane %v2013, 4
      %v2015 = vmax.f32 %v2013, %v2014
      %v2016 = vrot.slane %v2015, 2
      %v2017 = vmax.f32 %v2015, %v2016
      %v2018 = vrot.slane %v2017, 1
      %v2019 = vmax.f32 %v2017, %v2018
      %v2020 = vsel %vm1473, %v1423, -inf
      %v2021 = vrot.slane %v2020, 4
      %v2022 = vmax.f32 %v2020, %v2021
      %v2023 = vrot.slane %v2022, 2
      %v2024 = vmax.f32 %v2022, %v2023
      %v2025 = vrot.slane %v2024, 1
      %v2026 = vmax.f32 %v2024, %v2025
      %v2027 = vsel %vm1473, %v1424, -inf
      %v2028 = vrot.slane %v2027, 4
      %v2029 = vmax.f32 %v2027, %v2028
      %v2030 = vrot.slane %v2029, 2
      %v2031 = vmax.f32 %v2029, %v2030
      %v2032 = vrot.slane %v2031, 1
      %v2033 = vmax.f32 %v2031, %v2032
      %v2034 = vsel %vm1473, %v1425, -inf
      %v2035 = vrot.slane %v2034, 4
      %v2036 = vmax.f32 %v2034, %v2035
      %v2037 = vrot.slane %v2036, 2
      %v2038 = vmax.f32 %v2036, %v2037
      %v2039 = vrot.slane %v2038, 1
      %v2040 = vmax.f32 %v2038, %v2039
      %v2041 = vsel %vm1473, %v1426, -inf
      %v2042 = vrot.slane %v2041, 4
      %v2043 = vmax.f32 %v2041, %v2042
      %v2044 = vrot.slane %v2043, 2
      %v2045 = vmax.f32 %v2043, %v2044
      %v2046 = vrot.slane %v2045, 1
      %v2047 = vmax.f32 %v2045, %v2046
      %v2048 = vsel %vm1473, %v1427, -inf
      %v2049 = vrot.slane %v2048, 4
      %v2050 = vmax.f32 %v2048, %v2049
      %v2051 = vrot.slane %v2050, 2
      %v2052 = vmax.f32 %v2050, %v2051
      %v2053 = vrot.slane %v2052, 1
      %v2054 = vmax.f32 %v2052, %v2053
      %v2055 = vsel %vm1473, %v1428, -inf
      %v2056 = vrot.slane %v2055, 4
      %v2057 = vmax.f32 %v2055, %v2056
      %v2058 = vrot.slane %v2057, 2
      %v2059 = vmax.f32 %v2057, %v2058
      %v2060 = vrot.slane %v2059, 1
      %v2061 = vmax.f32 %v2059, %v2060
      %v2062 = vsel %vm1473, %v1429, -inf
      %v2063 = vrot.slane %v2062, 4
      %v2064 = vmax.f32 %v2062, %v2063
      %v2065 = vrot.slane %v2064, 2
      %v2066 = vmax.f32 %v2064, %v2065
      %v2067 = vrot.slane %v2066, 1
      %v2068 = vmax.f32 %v2066, %v2067
      %v2069 = vsel %vm1473, %v1430, -inf
      %v2070 = vrot.slane %v2069, 4
      %v2071 = vmax.f32 %v2069, %v2070
      %v2072 = vrot.slane %v2071, 2
      %v2073 = vmax.f32 %v2071, %v2072
      %v2074 = vrot.slane %v2073, 1
      %v2075 = vmax.f32 %v2073, %v2074
      %v2076 = vsel %vm1473, %v1431, -inf
      %v2077 = vrot.slane %v2076, 4
      %v2078 = vmax.f32 %v2076, %v2077
      %v2079 = vrot.slane %v2078, 2
      %v2080 = vmax.f32 %v2078, %v2079
      %v2081 = vrot.slane %v2080, 1
      %v2082 = vmax.f32 %v2080, %v2081
      %v2083 = vsel %vm1473, %v1432, -inf
      %v2084 = vrot.slane %v2083, 4
      %v2085 = vmax.f32 %v2083, %v2084
      %v2086 = vrot.slane %v2085, 2
      %v2087 = vmax.f32 %v2085, %v2086
      %v2088 = vrot.slane %v2087, 1
      %v2089 = vmax.f32 %v2087, %v2088
      %v2090 = vsel %vm1473, %v1433, -inf
      %v2091 = vrot.slane %v2090, 4
      %v2092 = vmax.f32 %v2090, %v2091
      %v2093 = vrot.slane %v2092, 2
      %v2094 = vmax.f32 %v2092, %v2093
      %v2095 = vrot.slane %v2094, 1
      %v2096 = vmax.f32 %v2094, %v2095
      %v2097 = vsel %vm1473, %v1434, -inf
      %v2098 = vrot.slane %v2097, 4
      %v2099 = vmax.f32 %v2097, %v2098
      %v2100 = vrot.slane %v2099, 2
      %v2101 = vmax.f32 %v2099, %v2100
      %v2102 = vrot.slane %v2101, 1
      %v2103 = vmax.f32 %v2101, %v2102
      %v2104 = vsel %vm1473, %v1435, -inf
      %v2105 = vrot.slane %v2104, 4
      %v2106 = vmax.f32 %v2104, %v2105
      %v2107 = vrot.slane %v2106, 2
      %v2108 = vmax.f32 %v2106, %v2107
      %v2109 = vrot.slane %v2108, 1
      %v2110 = vmax.f32 %v2108, %v2109
      %v2111 = vsel %vm1473, %v1436, -inf
      %v2112 = vrot.slane %v2111, 4
      %v2113 = vmax.f32 %v2111, %v2112
      %v2114 = vrot.slane %v2113, 2
      %v2115 = vmax.f32 %v2113, %v2114
      %v2116 = vrot.slane %v2115, 1
      %v2117 = vmax.f32 %v2115, %v2116
      %v2118 = vsel %vm1473, %v1437, -inf
      %v2119 = vrot.slane %v2118, 4
      %v2120 = vmax.f32 %v2118, %v2119
      %v2121 = vrot.slane %v2120, 2
      %v2122 = vmax.f32 %v2120, %v2121
      %v2123 = vrot.slane %v2122, 1
      %v2124 = vmax.f32 %v2122, %v2123
      %v2125 = vsel %vm1473, %v1438, -inf
      %v2126 = vrot.slane %v2125, 4
      %v2127 = vmax.f32 %v2125, %v2126
      %v2128 = vrot.slane %v2127, 2
      %v2129 = vmax.f32 %v2127, %v2128
      %v2130 = vrot.slane %v2129, 1
      %v2131 = vmax.f32 %v2129, %v2130
      %v2132 = vsel %vm1473, %v1439, -inf
      %v2133 = vrot.slane %v2132, 4
      %v2134 = vmax.f32 %v2132, %v2133
      %v2135 = vrot.slane %v2134, 2
      %v2136 = vmax.f32 %v2134, %v2135
      %v2137 = vrot.slane %v2136, 1
      %v2138 = vmax.f32 %v2136, %v2137
      %v2139 = vsel %vm1473, %v1440, -inf
      %v2140 = vrot.slane %v2139, 4
      %v2141 = vmax.f32 %v2139, %v2140
      %v2142 = vrot.slane %v2141, 2
      %v2143 = vmax.f32 %v2141, %v2142
      %v2144 = vrot.slane %v2143, 1
      %v2145 = vmax.f32 %v2143, %v2144
      %v2146 = vsel %vm1473, %v1441, -inf
      %v2147 = vrot.slane %v2146, 4
      %v2148 = vmax.f32 %v2146, %v2147
      %v2149 = vrot.slane %v2148, 2
      %v2150 = vmax.f32 %v2148, %v2149
      %v2151 = vrot.slane %v2150, 1
      %v2152 = vmax.f32 %v2150, %v2151
      %v2153 = vsel %vm1473, %v1442, -inf
      %v2154 = vrot.slane %v2153, 4
      %v2155 = vmax.f32 %v2153, %v2154
      %v2156 = vrot.slane %v2155, 2
      %v2157 = vmax.f32 %v2155, %v2156
      %v2158 = vrot.slane %v2157, 1
      %v2159 = vmax.f32 %v2157, %v2158
      %v2160 = vsel %vm1473, %v1443, -inf
      %v2161 = vrot.slane %v2160, 4
      %v2162 = vmax.f32 %v2160, %v2161
      %v2163 = vrot.slane %v2162, 2
      %v2164 = vmax.f32 %v2162, %v2163
      %v2165 = vrot.slane %v2164, 1
      %v2166 = vmax.f32 %v2164, %v2165
      %v2167 = vsel %vm1473, %v1444, -inf
      %v2168 = vrot.slane %v2167, 4
      %v2169 = vmax.f32 %v2167, %v2168
      %v2170 = vrot.slane %v2169, 2
      %v2171 = vmax.f32 %v2169, %v2170
      %v2172 = vrot.slane %v2171, 1
      %v2173 = vmax.f32 %v2171, %v2172
      %v2174 = vsel %vm1473, %v1445, -inf
      %v2175 = vrot.slane %v2174, 4
      %v2176 = vmax.f32 %v2174, %v2175
      %v2177 = vrot.slane %v2176, 2
      %v2178 = vmax.f32 %v2176, %v2177
      %v2179 = vrot.slane %v2178, 1
      %v2180 = vmax.f32 %v2178, %v2179
      %v2181 = vsel %vm1473, %v1446, -inf
      %v2182 = vrot.slane %v2181, 4
      %v2183 = vmax.f32 %v2181, %v2182
      %v2184 = vrot.slane %v2183, 2
      %v2185 = vmax.f32 %v2183, %v2184
      %v2186 = vrot.slane %v2185, 1
      %v2187 = vmax.f32 %v2185, %v2186
      %v2188 = vsel %vm1473, %v1447, -inf
      %v2189 = vrot.slane %v2188, 4
      %v2190 = vmax.f32 %v2188, %v2189
      %v2191 = vrot.slane %v2190, 2
      %v2192 = vmax.f32 %v2190, %v2191
      %v2193 = vrot.slane %v2192, 1
      %v2194 = vmax.f32 %v2192, %v2193
      %v2195 = vsel %vm1473, %v1448, -inf
      %v2196 = vrot.slane %v2195, 4
      %v2197 = vmax.f32 %v2195, %v2196
      %v2198 = vrot.slane %v2197, 2
      %v2199 = vmax.f32 %v2197, %v2198
      %v2200 = vrot.slane %v2199, 1
      %v2201 = vmax.f32 %v2199, %v2200
      %v2202 = vsel %vm1473, %v1449, -inf
      %v2203 = vrot.slane %v2202, 4
      %v2204 = vmax.f32 %v2202, %v2203
      %v2205 = vrot.slane %v2204, 2
      %v2206 = vmax.f32 %v2204, %v2205
      %v2207 = vrot.slane %v2206, 1
      %v2208 = vmax.f32 %v2206, %v2207
      %v2209 = vsel %vm1473, %v1450, -inf
      %v2210 = vrot.slane %v2209, 4
      %v2211 = vmax.f32 %v2209, %v2210
      %v2212 = vrot.slane %v2211, 2
      %v2213 = vmax.f32 %v2211, %v2212
      %v2214 = vrot.slane %v2213, 1
      %v2215 = vmax.f32 %v2213, %v2214
      %v2216 = vsel %vm1473, %v1451, -inf
      %v2217 = vrot.slane %v2216, 4
      %v2218 = vmax.f32 %v2216, %v2217
      %v2219 = vrot.slane %v2218, 2
      %v2220 = vmax.f32 %v2218, %v2219
      %v2221 = vrot.slane %v2220, 1
      %v2222 = vmax.f32 %v2220, %v2221
      %v2223 = vsel %vm1473, %v1452, -inf
      %v2224 = vrot.slane %v2223, 4
      %v2225 = vmax.f32 %v2223, %v2224
      %v2226 = vrot.slane %v2225, 2
      %v2227 = vmax.f32 %v2225, %v2226
      %v2228 = vrot.slane %v2227, 1
      %v2229 = vmax.f32 %v2227, %v2228
      %v2230 = vsel %vm1473, %v1453, -inf
      %v2231 = vrot.slane %v2230, 4
      %v2232 = vmax.f32 %v2230, %v2231
      %v2233 = vrot.slane %v2232, 2
      %v2234 = vmax.f32 %v2232, %v2233
      %v2235 = vrot.slane %v2234, 1
      %v2236 = vmax.f32 %v2234, %v2235
      %v2237 = vsel %vm1473, %v1454, -inf
      %v2238 = vrot.slane %v2237, 4
      %v2239 = vmax.f32 %v2237, %v2238
      %v2240 = vrot.slane %v2239, 2
      %v2241 = vmax.f32 %v2239, %v2240
      %v2242 = vrot.slane %v2241, 1
      %v2243 = vmax.f32 %v2241, %v2242
      %v2244 = vsel %vm1473, %v1455, -inf
      %v2245 = vrot.slane %v2244, 4
      %v2246 = vmax.f32 %v2244, %v2245
      %v2247 = vrot.slane %v2246, 2
      %v2248 = vmax.f32 %v2246, %v2247
      %v2249 = vrot.slane %v2248, 1
      %v2250 = vmax.f32 %v2248, %v2249
      %v2251 = vsel %vm1473, %v1456, -inf
      %v2252 = vrot.slane %v2251, 4
      %v2253 = vmax.f32 %v2251, %v2252
      %v2254 = vrot.slane %v2253, 2
      %v2255 = vmax.f32 %v2253, %v2254
      %v2256 = vrot.slane %v2255, 1
      %v2257 = vmax.f32 %v2255, %v2256
      %v2258 = vsel %vm1473, %v1457, -inf
      %v2259 = vrot.slane %v2258, 4
      %v2260 = vmax.f32 %v2258, %v2259
      %v2261 = vrot.slane %v2260, 2
      %v2262 = vmax.f32 %v2260, %v2261
      %v2263 = vrot.slane %v2262, 1
      %v2264 = vmax.f32 %v2262, %v2263
      %v2265 = vsel %vm1473, %v1458, -inf
      %v2266 = vrot.slane %v2265, 4
      %v2267 = vmax.f32 %v2265, %v2266
      %v2268 = vrot.slane %v2267, 2
      %v2269 = vmax.f32 %v2267, %v2268
      %v2270 = vrot.slane %v2269, 1
      %v2271 = vmax.f32 %v2269, %v2270
      %v2272 = vsel %vm1473, %v1459, -inf
      %v2273 = vrot.slane %v2272, 4
      %v2274 = vmax.f32 %v2272, %v2273
      %v2275 = vrot.slane %v2274, 2
      %v2276 = vmax.f32 %v2274, %v2275
      %v2277 = vrot.slane %v2276, 1
      %v2278 = vmax.f32 %v2276, %v2277
      %v2279 = vsel %vm1473, %v1460, -inf
      %v2280 = vrot.slane %v2279, 4
      %v2281 = vmax.f32 %v2279, %v2280
      %v2282 = vrot.slane %v2281, 2
      %v2283 = vmax.f32 %v2281, %v2282
      %v2284 = vrot.slane %v2283, 1
      %v2285 = vmax.f32 %v2283, %v2284
      %v2286 = vsel %vm1473, %v1461, -inf
      %v2287 = vrot.slane %v2286, 4
      %v2288 = vmax.f32 %v2286, %v2287
      %v2289 = vrot.slane %v2288, 2
      %v2290 = vmax.f32 %v2288, %v2289
      %v2291 = vrot.slane %v2290, 1
      %v2292 = vmax.f32 %v2290, %v2291
      %v2293 = vsel %vm1473, %v1462, -inf
      %v2294 = vrot.slane %v2293, 4
      %v2295 = vmax.f32 %v2293, %v2294
      %v2296 = vrot.slane %v2295, 2
      %v2297 = vmax.f32 %v2295, %v2296
      %v2298 = vrot.slane %v2297, 1
      %v2299 = vmax.f32 %v2297, %v2298
      %v2300 = vsel %vm1473, %v1463, -inf
      %v2301 = vrot.slane %v2300, 4
      %v2302 = vmax.f32 %v2300, %v2301
      %v2303 = vrot.slane %v2302, 2
      %v2304 = vmax.f32 %v2302, %v2303
      %v2305 = vrot.slane %v2304, 1
      %v2306 = vmax.f32 %v2304, %v2305
      %v2307 = vsel %vm1473, %v1464, -inf
      %v2308 = vrot.slane %v2307, 4
      %v2309 = vmax.f32 %v2307, %v2308
      %v2310 = vrot.slane %v2309, 2
      %v2311 = vmax.f32 %v2309, %v2310
      %v2312 = vrot.slane %v2311, 1
      %v2313 = vmax.f32 %v2311, %v2312
      %v2314 = vsel %vm1473, %v1465, -inf
      %v2315 = vrot.slane %v2314, 4
      %v2316 = vmax.f32 %v2314, %v2315
      %v2317 = vrot.slane %v2316, 2
      %v2318 = vmax.f32 %v2316, %v2317
      %v2319 = vrot.slane %v2318, 1
      %v2320 = vmax.f32 %v2318, %v2319
      %v2321 = vsel %vm1473, %v1466, -inf
      %v2322 = vrot.slane %v2321, 4
      %v2323 = vmax.f32 %v2321, %v2322
      %v2324 = vrot.slane %v2323, 2
      %v2325 = vmax.f32 %v2323, %v2324
      %v2326 = vrot.slane %v2325, 1
      %v2327 = vmax.f32 %v2325, %v2326
      %v2328 = vsel %vm1473, %v1467, -inf
      %v2329 = vrot.slane %v2328, 4
      %v2330 = vmax.f32 %v2328, %v2329
      %v2331 = vrot.slane %v2330, 2
      %v2332 = vmax.f32 %v2330, %v2331
      %v2333 = vrot.slane %v2332, 1
      %v2334 = vmax.f32 %v2332, %v2333
      %v2335 = vsel %vm1473, %v1468, -inf
      %v2336 = vrot.slane %v2335, 4
      %v2337 = vmax.f32 %v2335, %v2336
      %v2338 = vrot.slane %v2337, 2
      %v2339 = vmax.f32 %v2337, %v2338
      %v2340 = vrot.slane %v2339, 1
      %v2341 = vmax.f32 %v2339, %v2340
      %v2342 = vsel %vm1473, %v1469, -inf
      %v2343 = vrot.slane %v2342, 4
      %v2344 = vmax.f32 %v2342, %v2343
      %v2345 = vrot.slane %v2344, 2
      %v2346 = vmax.f32 %v2344, %v2345
      %v2347 = vrot.slane %v2346, 1
      %v2348 = vmax.f32 %v2346, %v2347
      %v2349 = vsel %vm1473, %v1470, -inf
      %v2350 = vrot.slane %v2349, 4
      %v2351 = vmax.f32 %v2349, %v2350
      %v2352 = vrot.slane %v2351, 2
      %v2353 = vmax.f32 %v2351, %v2352
      %v2354 = vrot.slane %v2353, 1
      %v2355 = vmax.f32 %v2353, %v2354
      %v2356 = vsel %vm1473, %v1471, -inf
      %v2357 = vrot.slane %v2356, 4
      %v2358 = vmax.f32 %v2356, %v2357
      %v2359 = vrot.slane %v2358, 2
      %v2360 = vmax.f32 %v2358, %v2359
      %v2361 = vrot.slane %v2360, 1
      %v2362 = vmax.f32 %v2360, %v2361
      %v2363 = vsel %vm1473, %v1472, -inf
      %v2364 = vrot.slane %v2363, 4
      %v2365 = vmax.f32 %v2363, %v2364
      %v2366 = vrot.slane %v2365, 2
      %v2367 = vmax.f32 %v2365, %v2366
      %v2368 = vrot.slane %v2367, 1
      %v2369 = vmax.f32 %v2367, %v2368
      %v2370 = vpack.c.bf16 %v1480, %v1480
      %v2371 = vpack.c.bf16 %v1487, %v1487
      %v2372 = vpack.c.bf16 %v1494, %v1494
      %v2373 = vpack.c.bf16 %v1501, %v1501
      %v2374 = vpack.c.bf16 %v1508, %v1508
      %v2375 = vpack.c.bf16 %v1515, %v1515
      %v2376 = vpack.c.bf16 %v1522, %v1522
      %v2377 = vpack.c.bf16 %v1529, %v1529
      %v2378 = vpack.c.bf16 %v1536, %v1536
      %v2379 = vpack.c.bf16 %v1543, %v1543
      %v2380 = vpack.c.bf16 %v1550, %v1550
      %v2381 = vpack.c.bf16 %v1557, %v1557
      %v2382 = vpack.c.bf16 %v1564, %v1564
      %v2383 = vpack.c.bf16 %v1571, %v1571
      %v2384 = vpack.c.bf16 %v1578, %v1578
      %v2385 = vpack.c.bf16 %v1585, %v1585
      %v2386 = vpack.c.bf16 %v1592, %v1592
      %v2387 = vpack.c.bf16 %v1599, %v1599
      %v2388 = vpack.c.bf16 %v1606, %v1606
      %v2389 = vpack.c.bf16 %v1613, %v1613
      %v2390 = vpack.c.bf16 %v1620, %v1620
      %v2391 = vpack.c.bf16 %v1627, %v1627
      %v2392 = vpack.c.bf16 %v1634, %v1634
      %v2393 = vpack.c.bf16 %v1641, %v1641
      %v2394 = vpack.c.bf16 %v1648, %v1648
      %v2395 = vpack.c.bf16 %v1655, %v1655
      %v2396 = vpack.c.bf16 %v1662, %v1662
      %v2397 = vpack.c.bf16 %v1669, %v1669
      %v2398 = vpack.c.bf16 %v1676, %v1676
      %v2399 = vpack.c.bf16 %v1683, %v1683
      %v2400 = vpack.c.bf16 %v1690, %v1690
      %v2401 = vpack.c.bf16 %v1697, %v1697
      %v2402 = vpack.c.bf16 %v1704, %v1704
      %v2403 = vpack.c.bf16 %v1711, %v1711
      %v2404 = vpack.c.bf16 %v1718, %v1718
      %v2405 = vpack.c.bf16 %v1725, %v1725
      %v2406 = vpack.c.bf16 %v1732, %v1732
      %v2407 = vpack.c.bf16 %v1739, %v1739
      %v2408 = vpack.c.bf16 %v1746, %v1746
      %v2409 = vpack.c.bf16 %v1753, %v1753
      %v2410 = vpack.c.bf16 %v1760, %v1760
      %v2411 = vpack.c.bf16 %v1767, %v1767
      %v2412 = vpack.c.bf16 %v1774, %v1774
      %v2413 = vpack.c.bf16 %v1781, %v1781
      %v2414 = vpack.c.bf16 %v1788, %v1788
      %v2415 = vpack.c.bf16 %v1795, %v1795
      %v2416 = vpack.c.bf16 %v1802, %v1802
      %v2417 = vpack.c.bf16 %v1809, %v1809
      %v2418 = vpack.c.bf16 %v1816, %v1816
      %v2419 = vpack.c.bf16 %v1823, %v1823
      %v2420 = vpack.c.bf16 %v1830, %v1830
      %v2421 = vpack.c.bf16 %v1837, %v1837
      %v2422 = vpack.c.bf16 %v1844, %v1844
      %v2423 = vpack.c.bf16 %v1851, %v1851
      %v2424 = vpack.c.bf16 %v1858, %v1858
      %v2425 = vpack.c.bf16 %v1865, %v1865
      %v2426 = vpack.c.bf16 %v1872, %v1872
      %v2427 = vpack.c.bf16 %v1879, %v1879
      %v2428 = vpack.c.bf16 %v1886, %v1886
      %v2429 = vpack.c.bf16 %v1893, %v1893
      %v2430 = vpack.c.bf16 %v1900, %v1900
      %v2431 = vpack.c.bf16 %v1907, %v1907
      %v2432 = vpack.c.bf16 %v1914, %v1914
      %v2433 = vpack.c.bf16 %v1921, %v1921
      %v2434 = vpack.c.bf16 %v1928, %v1928
      %v2435 = vpack.c.bf16 %v1935, %v1935
      %v2436 = vpack.c.bf16 %v1942, %v1942
      %v2437 = vpack.c.bf16 %v1949, %v1949
      %v2438 = vpack.c.bf16 %v1956, %v1956
      %v2439 = vpack.c.bf16 %v1963, %v1963
      %v2440 = vpack.c.bf16 %v1970, %v1970
      %v2441 = vpack.c.bf16 %v1977, %v1977
      %v2442 = vpack.c.bf16 %v1984, %v1984
      %v2443 = vpack.c.bf16 %v1991, %v1991
      %v2444 = vpack.c.bf16 %v1998, %v1998
      %v2445 = vpack.c.bf16 %v2005, %v2005
      %v2446 = vpack.c.bf16 %v2012, %v2012
      %v2447 = vpack.c.bf16 %v2019, %v2019
      %v2448 = vpack.c.bf16 %v2026, %v2026
      %v2449 = vpack.c.bf16 %v2033, %v2033
      %v2450 = vpack.c.bf16 %v2040, %v2040
      %v2451 = vpack.c.bf16 %v2047, %v2047
      %v2452 = vpack.c.bf16 %v2054, %v2054
      %v2453 = vpack.c.bf16 %v2061, %v2061
      %v2454 = vpack.c.bf16 %v2068, %v2068
      %v2455 = vpack.c.bf16 %v2075, %v2075
      %v2456 = vpack.c.bf16 %v2082, %v2082
      %v2457 = vpack.c.bf16 %v2089, %v2089
      %v2458 = vpack.c.bf16 %v2096, %v2096
      %v2459 = vpack.c.bf16 %v2103, %v2103
      %v2460 = vpack.c.bf16 %v2110, %v2110
      %v2461 = vpack.c.bf16 %v2117, %v2117
      %v2462 = vpack.c.bf16 %v2124, %v2124
      %v2463 = vpack.c.bf16 %v2131, %v2131
      %v2464 = vpack.c.bf16 %v2138, %v2138
      %v2465 = vpack.c.bf16 %v2145, %v2145
      %v2466 = vpack.c.bf16 %v2152, %v2152
      %v2467 = vpack.c.bf16 %v2159, %v2159
      %v2468 = vpack.c.bf16 %v2166, %v2166
      %v2469 = vpack.c.bf16 %v2173, %v2173
      %v2470 = vpack.c.bf16 %v2180, %v2180
      %v2471 = vpack.c.bf16 %v2187, %v2187
      %v2472 = vpack.c.bf16 %v2194, %v2194
      %v2473 = vpack.c.bf16 %v2201, %v2201
      %v2474 = vpack.c.bf16 %v2208, %v2208
      %v2475 = vpack.c.bf16 %v2215, %v2215
      %v2476 = vpack.c.bf16 %v2222, %v2222
      %v2477 = vpack.c.bf16 %v2229, %v2229
      %v2478 = vpack.c.bf16 %v2236, %v2236
      %v2479 = vpack.c.bf16 %v2243, %v2243
      %v2480 = vpack.c.bf16 %v2250, %v2250
      %v2481 = vpack.c.bf16 %v2257, %v2257
      %v2482 = vpack.c.bf16 %v2264, %v2264
      %v2483 = vpack.c.bf16 %v2271, %v2271
      %v2484 = vpack.c.bf16 %v2278, %v2278
      %v2485 = vpack.c.bf16 %v2285, %v2285
      %v2486 = vpack.c.bf16 %v2292, %v2292
      %v2487 = vpack.c.bf16 %v2299, %v2299
      %v2488 = vpack.c.bf16 %v2306, %v2306
      %v2489 = vpack.c.bf16 %v2313, %v2313
      %v2490 = vpack.c.bf16 %v2320, %v2320
      %v2491 = vpack.c.bf16 %v2327, %v2327
      %v2492 = vpack.c.bf16 %v2334, %v2334
      %v2493 = vpack.c.bf16 %v2341, %v2341
      %v2494 = vpack.c.bf16 %v2348, %v2348
      %v2495 = vpack.c.bf16 %v2355, %v2355
      %v2496 = vpack.c.bf16 %v2362, %v2362
      %v2497 = vpack.c.bf16 %v2369, %v2369
      %v2626 = vunpack.c.l.b16 %v2370
      %v2627 = vunpack.c.l.b16 %v2371
      %v2628 = vunpack.c.l.b16 %v2372
      %v2629 = vunpack.c.l.b16 %v2373
      %v2630 = vunpack.c.l.b16 %v2374
      %v2631 = vunpack.c.l.b16 %v2375
      %v2632 = vunpack.c.l.b16 %v2376
      %v2633 = vunpack.c.l.b16 %v2377
      %v2634 = vunpack.c.l.b16 %v2378
      %v2635 = vunpack.c.l.b16 %v2379
      %v2636 = vunpack.c.l.b16 %v2380
      %v2637 = vunpack.c.l.b16 %v2381
      %v2638 = vunpack.c.l.b16 %v2382
      %v2639 = vunpack.c.l.b16 %v2383
      %v2640 = vunpack.c.l.b16 %v2384
      %v2641 = vunpack.c.l.b16 %v2385
      %v2642 = vunpack.c.l.b16 %v2386
      %v2643 = vunpack.c.l.b16 %v2387
      %v2644 = vunpack.c.l.b16 %v2388
      %v2645 = vunpack.c.l.b16 %v2389
      %v2646 = vunpack.c.l.b16 %v2390
      %v2647 = vunpack.c.l.b16 %v2391
      %v2648 = vunpack.c.l.b16 %v2392
      %v2649 = vunpack.c.l.b16 %v2393
      %v2650 = vunpack.c.l.b16 %v2394
      %v2651 = vunpack.c.l.b16 %v2395
      %v2652 = vunpack.c.l.b16 %v2396
      %v2653 = vunpack.c.l.b16 %v2397
      %v2654 = vunpack.c.l.b16 %v2398
      %v2655 = vunpack.c.l.b16 %v2399
      %v2656 = vunpack.c.l.b16 %v2400
      %v2657 = vunpack.c.l.b16 %v2401
      %v2658 = vunpack.c.l.b16 %v2402
      %v2659 = vunpack.c.l.b16 %v2403
      %v2660 = vunpack.c.l.b16 %v2404
      %v2661 = vunpack.c.l.b16 %v2405
      %v2662 = vunpack.c.l.b16 %v2406
      %v2663 = vunpack.c.l.b16 %v2407
      %v2664 = vunpack.c.l.b16 %v2408
      %v2665 = vunpack.c.l.b16 %v2409
      %v2666 = vunpack.c.l.b16 %v2410
      %v2667 = vunpack.c.l.b16 %v2411
      %v2668 = vunpack.c.l.b16 %v2412
      %v2669 = vunpack.c.l.b16 %v2413
      %v2670 = vunpack.c.l.b16 %v2414
      %v2671 = vunpack.c.l.b16 %v2415
      %v2672 = vunpack.c.l.b16 %v2416
      %v2673 = vunpack.c.l.b16 %v2417
      %v2674 = vunpack.c.l.b16 %v2418
      %v2675 = vunpack.c.l.b16 %v2419
      %v2676 = vunpack.c.l.b16 %v2420
      %v2677 = vunpack.c.l.b16 %v2421
      %v2678 = vunpack.c.l.b16 %v2422
      %v2679 = vunpack.c.l.b16 %v2423
      %v2680 = vunpack.c.l.b16 %v2424
      %v2681 = vunpack.c.l.b16 %v2425
      %v2682 = vunpack.c.l.b16 %v2426
      %v2683 = vunpack.c.l.b16 %v2427
      %v2684 = vunpack.c.l.b16 %v2428
      %v2685 = vunpack.c.l.b16 %v2429
      %v2686 = vunpack.c.l.b16 %v2430
      %v2687 = vunpack.c.l.b16 %v2431
      %v2688 = vunpack.c.l.b16 %v2432
      %v2689 = vunpack.c.l.b16 %v2433
      %v2690 = vunpack.c.l.b16 %v2434
      %v2691 = vunpack.c.l.b16 %v2435
      %v2692 = vunpack.c.l.b16 %v2436
      %v2693 = vunpack.c.l.b16 %v2437
      %v2694 = vunpack.c.l.b16 %v2438
      %v2695 = vunpack.c.l.b16 %v2439
      %v2696 = vunpack.c.l.b16 %v2440
      %v2697 = vunpack.c.l.b16 %v2441
      %v2698 = vunpack.c.l.b16 %v2442
      %v2699 = vunpack.c.l.b16 %v2443
      %v2700 = vunpack.c.l.b16 %v2444
      %v2701 = vunpack.c.l.b16 %v2445
      %v2702 = vunpack.c.l.b16 %v2446
      %v2703 = vunpack.c.l.b16 %v2447
      %v2704 = vunpack.c.l.b16 %v2448
      %v2705 = vunpack.c.l.b16 %v2449
      %v2706 = vunpack.c.l.b16 %v2450
      %v2707 = vunpack.c.l.b16 %v2451
      %v2708 = vunpack.c.l.b16 %v2452
      %v2709 = vunpack.c.l.b16 %v2453
      %v2710 = vunpack.c.l.b16 %v2454
      %v2711 = vunpack.c.l.b16 %v2455
      %v2712 = vunpack.c.l.b16 %v2456
      %v2713 = vunpack.c.l.b16 %v2457
      %v2714 = vunpack.c.l.b16 %v2458
      %v2715 = vunpack.c.l.b16 %v2459
      %v2716 = vunpack.c.l.b16 %v2460
      %v2717 = vunpack.c.l.b16 %v2461
      %v2718 = vunpack.c.l.b16 %v2462
      %v2719 = vunpack.c.l.b16 %v2463
      %v2720 = vunpack.c.l.b16 %v2464
      %v2721 = vunpack.c.l.b16 %v2465
      %v2722 = vunpack.c.l.b16 %v2466
      %v2723 = vunpack.c.l.b16 %v2467
      %v2724 = vunpack.c.l.b16 %v2468
      %v2725 = vunpack.c.l.b16 %v2469
      %v2726 = vunpack.c.l.b16 %v2470
      %v2727 = vunpack.c.l.b16 %v2471
      %v2728 = vunpack.c.l.b16 %v2472
      %v2729 = vunpack.c.l.b16 %v2473
      %v2730 = vunpack.c.l.b16 %v2474
      %v2731 = vunpack.c.l.b16 %v2475
      %v2732 = vunpack.c.l.b16 %v2476
      %v2733 = vunpack.c.l.b16 %v2477
      %v2734 = vunpack.c.l.b16 %v2478
      %v2735 = vunpack.c.l.b16 %v2479
      %v2736 = vunpack.c.l.b16 %v2480
      %v2737 = vunpack.c.l.b16 %v2481
      %v2738 = vunpack.c.l.b16 %v2482
      %v2739 = vunpack.c.l.b16 %v2483
      %v2740 = vunpack.c.l.b16 %v2484
      %v2741 = vunpack.c.l.b16 %v2485
      %v2742 = vunpack.c.l.b16 %v2486
      %v2743 = vunpack.c.l.b16 %v2487
      %v2744 = vunpack.c.l.b16 %v2488
      %v2745 = vunpack.c.l.b16 %v2489
      %v2746 = vunpack.c.l.b16 %v2490
      %v2747 = vunpack.c.l.b16 %v2491
      %v2748 = vunpack.c.l.b16 %v2492
      %v2749 = vunpack.c.l.b16 %v2493
      %v2750 = vunpack.c.l.b16 %v2494
      %v2751 = vunpack.c.l.b16 %v2495
      %v2752 = vunpack.c.l.b16 %v2496
      %v2753 = vunpack.c.l.b16 %v2497
      %v2754 = vpack.c.b16 %v2626, %v2626
      %v2755 = vpack.c.b16 %v2627, %v2627
      %v2756 = vpack.c.b16 %v2628, %v2628
      %v2757 = vpack.c.b16 %v2629, %v2629
      %v2758 = vpack.c.b16 %v2630, %v2630
      %v2759 = vpack.c.b16 %v2631, %v2631
      %v2760 = vpack.c.b16 %v2632, %v2632
      %v2761 = vpack.c.b16 %v2633, %v2633
      %v2762 = vpack.c.b16 %v2634, %v2634
      %v2763 = vpack.c.b16 %v2635, %v2635
      %v2764 = vpack.c.b16 %v2636, %v2636
      %v2765 = vpack.c.b16 %v2637, %v2637
      %v2766 = vpack.c.b16 %v2638, %v2638
      %v2767 = vpack.c.b16 %v2639, %v2639
      %v2768 = vpack.c.b16 %v2640, %v2640
      %v2769 = vpack.c.b16 %v2641, %v2641
      %v2770 = vpack.c.b16 %v2642, %v2642
      %v2771 = vpack.c.b16 %v2643, %v2643
      %v2772 = vpack.c.b16 %v2644, %v2644
      %v2773 = vpack.c.b16 %v2645, %v2645
      %v2774 = vpack.c.b16 %v2646, %v2646
      %v2775 = vpack.c.b16 %v2647, %v2647
      %v2776 = vpack.c.b16 %v2648, %v2648
      %v2777 = vpack.c.b16 %v2649, %v2649
      %v2778 = vpack.c.b16 %v2650, %v2650
      %v2779 = vpack.c.b16 %v2651, %v2651
      %v2780 = vpack.c.b16 %v2652, %v2652
      %v2781 = vpack.c.b16 %v2653, %v2653
      %v2782 = vpack.c.b16 %v2654, %v2654
      %v2783 = vpack.c.b16 %v2655, %v2655
      %v2784 = vpack.c.b16 %v2656, %v2656
      %v2785 = vpack.c.b16 %v2657, %v2657
      %v2786 = vpack.c.b16 %v2658, %v2658
      %v2787 = vpack.c.b16 %v2659, %v2659
      %v2788 = vpack.c.b16 %v2660, %v2660
      %v2789 = vpack.c.b16 %v2661, %v2661
      %v2790 = vpack.c.b16 %v2662, %v2662
      %v2791 = vpack.c.b16 %v2663, %v2663
      %v2792 = vpack.c.b16 %v2664, %v2664
      %v2793 = vpack.c.b16 %v2665, %v2665
      %v2794 = vpack.c.b16 %v2666, %v2666
      %v2795 = vpack.c.b16 %v2667, %v2667
      %v2796 = vpack.c.b16 %v2668, %v2668
      %v2797 = vpack.c.b16 %v2669, %v2669
      %v2798 = vpack.c.b16 %v2670, %v2670
      %v2799 = vpack.c.b16 %v2671, %v2671
      %v2800 = vpack.c.b16 %v2672, %v2672
      %v2801 = vpack.c.b16 %v2673, %v2673
      %v2802 = vpack.c.b16 %v2674, %v2674
      %v2803 = vpack.c.b16 %v2675, %v2675
      %v2804 = vpack.c.b16 %v2676, %v2676
      %v2805 = vpack.c.b16 %v2677, %v2677
      %v2806 = vpack.c.b16 %v2678, %v2678
      %v2807 = vpack.c.b16 %v2679, %v2679
      %v2808 = vpack.c.b16 %v2680, %v2680
      %v2809 = vpack.c.b16 %v2681, %v2681
      %v2810 = vpack.c.b16 %v2682, %v2682
      %v2811 = vpack.c.b16 %v2683, %v2683
      %v2812 = vpack.c.b16 %v2684, %v2684
      %v2813 = vpack.c.b16 %v2685, %v2685
      %v2814 = vpack.c.b16 %v2686, %v2686
      %v2815 = vpack.c.b16 %v2687, %v2687
      %v2816 = vpack.c.b16 %v2688, %v2688
      %v2817 = vpack.c.b16 %v2689, %v2689
      %v2818 = vpack.c.b16 %v2690, %v2690
      %v2819 = vpack.c.b16 %v2691, %v2691
      %v2820 = vpack.c.b16 %v2692, %v2692
      %v2821 = vpack.c.b16 %v2693, %v2693
      %v2822 = vpack.c.b16 %v2694, %v2694
      %v2823 = vpack.c.b16 %v2695, %v2695
      %v2824 = vpack.c.b16 %v2696, %v2696
      %v2825 = vpack.c.b16 %v2697, %v2697
      %v2826 = vpack.c.b16 %v2698, %v2698
      %v2827 = vpack.c.b16 %v2699, %v2699
      %v2828 = vpack.c.b16 %v2700, %v2700
      %v2829 = vpack.c.b16 %v2701, %v2701
      %v2830 = vpack.c.b16 %v2702, %v2702
      %v2831 = vpack.c.b16 %v2703, %v2703
      %v2832 = vpack.c.b16 %v2704, %v2704
      %v2833 = vpack.c.b16 %v2705, %v2705
      %v2834 = vpack.c.b16 %v2706, %v2706
      %v2835 = vpack.c.b16 %v2707, %v2707
      %v2836 = vpack.c.b16 %v2708, %v2708
      %v2837 = vpack.c.b16 %v2709, %v2709
      %v2838 = vpack.c.b16 %v2710, %v2710
      %v2839 = vpack.c.b16 %v2711, %v2711
      %v2840 = vpack.c.b16 %v2712, %v2712
      %v2841 = vpack.c.b16 %v2713, %v2713
      %v2842 = vpack.c.b16 %v2714, %v2714
      %v2843 = vpack.c.b16 %v2715, %v2715
      %v2844 = vpack.c.b16 %v2716, %v2716
      %v2845 = vpack.c.b16 %v2717, %v2717
      %v2846 = vpack.c.b16 %v2718, %v2718
      %v2847 = vpack.c.b16 %v2719, %v2719
      %v2848 = vpack.c.b16 %v2720, %v2720
      %v2849 = vpack.c.b16 %v2721, %v2721
      %v2850 = vpack.c.b16 %v2722, %v2722
      %v2851 = vpack.c.b16 %v2723, %v2723
      %v2852 = vpack.c.b16 %v2724, %v2724
      %v2853 = vpack.c.b16 %v2725, %v2725
      %v2854 = vpack.c.b16 %v2726, %v2726
      %v2855 = vpack.c.b16 %v2727, %v2727
      %v2856 = vpack.c.b16 %v2728, %v2728
      %v2857 = vpack.c.b16 %v2729, %v2729
      %v2858 = vpack.c.b16 %v2730, %v2730
      %v2859 = vpack.c.b16 %v2731, %v2731
      %v2860 = vpack.c.b16 %v2732, %v2732
      %v2861 = vpack.c.b16 %v2733, %v2733
      %v2862 = vpack.c.b16 %v2734, %v2734
      %v2863 = vpack.c.b16 %v2735, %v2735
      %v2864 = vpack.c.b16 %v2736, %v2736
      %v2865 = vpack.c.b16 %v2737, %v2737
      %v2866 = vpack.c.b16 %v2738, %v2738
      %v2867 = vpack.c.b16 %v2739, %v2739
      %v2868 = vpack.c.b16 %v2740, %v2740
      %v2869 = vpack.c.b16 %v2741, %v2741
      %v2870 = vpack.c.b16 %v2742, %v2742
      %v2871 = vpack.c.b16 %v2743, %v2743
      %v2872 = vpack.c.b16 %v2744, %v2744
      %v2873 = vpack.c.b16 %v2745, %v2745
      %v2874 = vpack.c.b16 %v2746, %v2746
      %v2875 = vpack.c.b16 %v2747, %v2747
      %v2876 = vpack.c.b16 %v2748, %v2748
      %v2877 = vpack.c.b16 %v2749, %v2749
      %v2878 = vpack.c.b16 %v2750, %v2750
      %v2879 = vpack.c.b16 %v2751, %v2751
      %v2880 = vpack.c.b16 %v2752, %v2752
      %v2881 = vpack.c.b16 %v2753, %v2753
      %v2882 = vunpack.c.l.b16 %v2754
      %v2883 = vunpack.c.l.b16 %v2755
      %v2884 = vunpack.c.l.b16 %v2756
      %v2885 = vunpack.c.l.b16 %v2757
      %v2886 = vunpack.c.l.b16 %v2758
      %v2887 = vunpack.c.l.b16 %v2759
      %v2888 = vunpack.c.l.b16 %v2760
      %v2889 = vunpack.c.l.b16 %v2761
      %v2890 = vunpack.c.l.b16 %v2762
      %v2891 = vunpack.c.l.b16 %v2763
      %v2892 = vunpack.c.l.b16 %v2764
      %v2893 = vunpack.c.l.b16 %v2765
      %v2894 = vunpack.c.l.b16 %v2766
      %v2895 = vunpack.c.l.b16 %v2767
      %v2896 = vunpack.c.l.b16 %v2768
      %v2897 = vunpack.c.l.b16 %v2769
      %v2898 = vunpack.c.l.b16 %v2770
      %v2899 = vunpack.c.l.b16 %v2771
      %v2900 = vunpack.c.l.b16 %v2772
      %v2901 = vunpack.c.l.b16 %v2773
      %v2902 = vunpack.c.l.b16 %v2774
      %v2903 = vunpack.c.l.b16 %v2775
      %v2904 = vunpack.c.l.b16 %v2776
      %v2905 = vunpack.c.l.b16 %v2777
      %v2906 = vunpack.c.l.b16 %v2778
      %v2907 = vunpack.c.l.b16 %v2779
      %v2908 = vunpack.c.l.b16 %v2780
      %v2909 = vunpack.c.l.b16 %v2781
      %v2910 = vunpack.c.l.b16 %v2782
      %v2911 = vunpack.c.l.b16 %v2783
      %v2912 = vunpack.c.l.b16 %v2784
      %v2913 = vunpack.c.l.b16 %v2785
      %v2914 = vunpack.c.l.b16 %v2786
      %v2915 = vunpack.c.l.b16 %v2787
      %v2916 = vunpack.c.l.b16 %v2788
      %v2917 = vunpack.c.l.b16 %v2789
      %v2918 = vunpack.c.l.b16 %v2790
      %v2919 = vunpack.c.l.b16 %v2791
      %v2920 = vunpack.c.l.b16 %v2792
      %v2921 = vunpack.c.l.b16 %v2793
      %v2922 = vunpack.c.l.b16 %v2794
      %v2923 = vunpack.c.l.b16 %v2795
      %v2924 = vunpack.c.l.b16 %v2796
      %v2925 = vunpack.c.l.b16 %v2797
      %v2926 = vunpack.c.l.b16 %v2798
      %v2927 = vunpack.c.l.b16 %v2799
      %v2928 = vunpack.c.l.b16 %v2800
      %v2929 = vunpack.c.l.b16 %v2801
      %v2930 = vunpack.c.l.b16 %v2802
      %v2931 = vunpack.c.l.b16 %v2803
      %v2932 = vunpack.c.l.b16 %v2804
      %v2933 = vunpack.c.l.b16 %v2805
      %v2934 = vunpack.c.l.b16 %v2806
      %v2935 = vunpack.c.l.b16 %v2807
      %v2936 = vunpack.c.l.b16 %v2808
      %v2937 = vunpack.c.l.b16 %v2809
      %v2938 = vunpack.c.l.b16 %v2810
      %v2939 = vunpack.c.l.b16 %v2811
      %v2940 = vunpack.c.l.b16 %v2812
      %v2941 = vunpack.c.l.b16 %v2813
      %v2942 = vunpack.c.l.b16 %v2814
      %v2943 = vunpack.c.l.b16 %v2815
      %v2944 = vunpack.c.l.b16 %v2816
      %v2945 = vunpack.c.l.b16 %v2817
      %v2946 = vunpack.c.l.b16 %v2818
      %v2947 = vunpack.c.l.b16 %v2819
      %v2948 = vunpack.c.l.b16 %v2820
      %v2949 = vunpack.c.l.b16 %v2821
      %v2950 = vunpack.c.l.b16 %v2822
      %v2951 = vunpack.c.l.b16 %v2823
      %v2952 = vunpack.c.l.b16 %v2824
      %v2953 = vunpack.c.l.b16 %v2825
      %v2954 = vunpack.c.l.b16 %v2826
      %v2955 = vunpack.c.l.b16 %v2827
      %v2956 = vunpack.c.l.b16 %v2828
      %v2957 = vunpack.c.l.b16 %v2829
      %v2958 = vunpack.c.l.b16 %v2830
      %v2959 = vunpack.c.l.b16 %v2831
      %v2960 = vunpack.c.l.b16 %v2832
      %v2961 = vunpack.c.l.b16 %v2833
      %v2962 = vunpack.c.l.b16 %v2834
      %v2963 = vunpack.c.l.b16 %v2835
      %v2964 = vunpack.c.l.b16 %v2836
      %v2965 = vunpack.c.l.b16 %v2837
      %v2966 = vunpack.c.l.b16 %v2838
      %v2967 = vunpack.c.l.b16 %v2839
      %v2968 = vunpack.c.l.b16 %v2840
      %v2969 = vunpack.c.l.b16 %v2841
      %v2970 = vunpack.c.l.b16 %v2842
      %v2971 = vunpack.c.l.b16 %v2843
      %v2972 = vunpack.c.l.b16 %v2844
      %v2973 = vunpack.c.l.b16 %v2845
      %v2974 = vunpack.c.l.b16 %v2846
      %v2975 = vunpack.c.l.b16 %v2847
      %v2976 = vunpack.c.l.b16 %v2848
      %v2977 = vunpack.c.l.b16 %v2849
      %v2978 = vunpack.c.l.b16 %v2850
      %v2979 = vunpack.c.l.b16 %v2851
      %v2980 = vunpack.c.l.b16 %v2852
      %v2981 = vunpack.c.l.b16 %v2853
      %v2982 = vunpack.c.l.b16 %v2854
      %v2983 = vunpack.c.l.b16 %v2855
      %v2984 = vunpack.c.l.b16 %v2856
      %v2985 = vunpack.c.l.b16 %v2857
      %v2986 = vunpack.c.l.b16 %v2858
      %v2987 = vunpack.c.l.b16 %v2859
      %v2988 = vunpack.c.l.b16 %v2860
      %v2989 = vunpack.c.l.b16 %v2861
      %v2990 = vunpack.c.l.b16 %v2862
      %v2991 = vunpack.c.l.b16 %v2863
      %v2992 = vunpack.c.l.b16 %v2864
      %v2993 = vunpack.c.l.b16 %v2865
      %v2994 = vunpack.c.l.b16 %v2866
      %v2995 = vunpack.c.l.b16 %v2867
      %v2996 = vunpack.c.l.b16 %v2868
      %v2997 = vunpack.c.l.b16 %v2869
      %v2998 = vunpack.c.l.b16 %v2870
      %v2999 = vunpack.c.l.b16 %v2871
      %v3000 = vunpack.c.l.b16 %v2872
      %v3001 = vunpack.c.l.b16 %v2873
      %v3002 = vunpack.c.l.b16 %v2874
      %v3003 = vunpack.c.l.b16 %v2875
      %v3004 = vunpack.c.l.b16 %v2876
      %v3005 = vunpack.c.l.b16 %v2877
      %v3006 = vunpack.c.l.b16 %v2878
      %v3007 = vunpack.c.l.b16 %v2879
      %v3008 = vunpack.c.l.b16 %v2880
      %v3009 = vunpack.c.l.b16 %v2881
      %vm3010 = vcmask 1041409
      %v3011 = vsel %vm3010, %v2883, %v2882
      %vm3012 = vcmask 1042434
      %v3013 = vsel %vm3012, %v2884, %v3011
      %vm3014 = vcmask 1043459
      %v3015 = vsel %vm3014, %v2885, %v3013
      %vm3016 = vcmask 1044484
      %v3017 = vsel %vm3016, %v2886, %v3015
      %vm3018 = vcmask 1045509
      %v3019 = vsel %vm3018, %v2887, %v3017
      %vm3020 = vcmask 1046534
      %v3021 = vsel %vm3020, %v2888, %v3019
      %vm3022 = vcmask 1047559
      %v3023 = vsel %vm3022, %v2889, %v3021
      %v3024 = vsel %vm3010, %v2891, %v2890
      %v3025 = vsel %vm3012, %v2892, %v3024
      %v3026 = vsel %vm3014, %v2893, %v3025
      %v3027 = vsel %vm3016, %v2894, %v3026
      %v3028 = vsel %vm3018, %v2895, %v3027
      %v3029 = vsel %vm3020, %v2896, %v3028
      %v3030 = vsel %vm3022, %v2897, %v3029
      %v3031 = vsel %vm3010, %v2899, %v2898
      %v3032 = vsel %vm3012, %v2900, %v3031
      %v3033 = vsel %vm3014, %v2901, %v3032
      %v3034 = vsel %vm3016, %v2902, %v3033
      %v3035 = vsel %vm3018, %v2903, %v3034
      %v3036 = vsel %vm3020, %v2904, %v3035
      %v3037 = vsel %vm3022, %v2905, %v3036
      %v3038 = vsel %vm3010, %v2907, %v2906
      %v3039 = vsel %vm3012, %v2908, %v3038
      %v3040 = vsel %vm3014, %v2909, %v3039
      %v3041 = vsel %vm3016, %v2910, %v3040
      %v3042 = vsel %vm3018, %v2911, %v3041
      %v3043 = vsel %vm3020, %v2912, %v3042
      %v3044 = vsel %vm3022, %v2913, %v3043
      %v3045 = vsel %vm3010, %v2915, %v2914
      %v3046 = vsel %vm3012, %v2916, %v3045
      %v3047 = vsel %vm3014, %v2917, %v3046
      %v3048 = vsel %vm3016, %v2918, %v3047
      %v3049 = vsel %vm3018, %v2919, %v3048
      %v3050 = vsel %vm3020, %v2920, %v3049
      %v3051 = vsel %vm3022, %v2921, %v3050
      %v3052 = vsel %vm3010, %v2923, %v2922
      %v3053 = vsel %vm3012, %v2924, %v3052
      %v3054 = vsel %vm3014, %v2925, %v3053
      %v3055 = vsel %vm3016, %v2926, %v3054
      %v3056 = vsel %vm3018, %v2927, %v3055
      %v3057 = vsel %vm3020, %v2928, %v3056
      %v3058 = vsel %vm3022, %v2929, %v3057
      %v3059 = vsel %vm3010, %v2931, %v2930
      %v3060 = vsel %vm3012, %v2932, %v3059
      %v3061 = vsel %vm3014, %v2933, %v3060
      %v3062 = vsel %vm3016, %v2934, %v3061
      %v3063 = vsel %vm3018, %v2935, %v3062
      %v3064 = vsel %vm3020, %v2936, %v3063
      %v3065 = vsel %vm3022, %v2937, %v3064
      %v3066 = vsel %vm3010, %v2939, %v2938
      %v3067 = vsel %vm3012, %v2940, %v3066
      %v3068 = vsel %vm3014, %v2941, %v3067
      %v3069 = vsel %vm3016, %v2942, %v3068
      %v3070 = vsel %vm3018, %v2943, %v3069
      %v3071 = vsel %vm3020, %v2944, %v3070
      %v3072 = vsel %vm3022, %v2945, %v3071
      %v3073 = vsel %vm3010, %v2947, %v2946
      %v3074 = vsel %vm3012, %v2948, %v3073
      %v3075 = vsel %vm3014, %v2949, %v3074
      %v3076 = vsel %vm3016, %v2950, %v3075
      %v3077 = vsel %vm3018, %v2951, %v3076
      %v3078 = vsel %vm3020, %v2952, %v3077
      %v3079 = vsel %vm3022, %v2953, %v3078
      %v3080 = vsel %vm3010, %v2955, %v2954
      %v3081 = vsel %vm3012, %v2956, %v3080
      %v3082 = vsel %vm3014, %v2957, %v3081
      %v3083 = vsel %vm3016, %v2958, %v3082
      %v3084 = vsel %vm3018, %v2959, %v3083
      %v3085 = vsel %vm3020, %v2960, %v3084
      %v3086 = vsel %vm3022, %v2961, %v3085
      %v3087 = vsel %vm3010, %v2963, %v2962
      %v3088 = vsel %vm3012, %v2964, %v3087
      %v3089 = vsel %vm3014, %v2965, %v3088
      %v3090 = vsel %vm3016, %v2966, %v3089
      %v3091 = vsel %vm3018, %v2967, %v3090
      %v3092 = vsel %vm3020, %v2968, %v3091
      %v3093 = vsel %vm3022, %v2969, %v3092
      %v3094 = vsel %vm3010, %v2971, %v2970
      %v3095 = vsel %vm3012, %v2972, %v3094
      %v3096 = vsel %vm3014, %v2973, %v3095
      %v3097 = vsel %vm3016, %v2974, %v3096
      %v3098 = vsel %vm3018, %v2975, %v3097
      %v3099 = vsel %vm3020, %v2976, %v3098
      %v3100 = vsel %vm3022, %v2977, %v3099
      %v3101 = vsel %vm3010, %v2979, %v2978
      %v3102 = vsel %vm3012, %v2980, %v3101
      %v3103 = vsel %vm3014, %v2981, %v3102
      %v3104 = vsel %vm3016, %v2982, %v3103
      %v3105 = vsel %vm3018, %v2983, %v3104
      %v3106 = vsel %vm3020, %v2984, %v3105
      %v3107 = vsel %vm3022, %v2985, %v3106
      %v3108 = vsel %vm3010, %v2987, %v2986
      %v3109 = vsel %vm3012, %v2988, %v3108
      %v3110 = vsel %vm3014, %v2989, %v3109
      %v3111 = vsel %vm3016, %v2990, %v3110
      %v3112 = vsel %vm3018, %v2991, %v3111
      %v3113 = vsel %vm3020, %v2992, %v3112
      %v3114 = vsel %vm3022, %v2993, %v3113
      %v3115 = vsel %vm3010, %v2995, %v2994
      %v3116 = vsel %vm3012, %v2996, %v3115
      %v3117 = vsel %vm3014, %v2997, %v3116
      %v3118 = vsel %vm3016, %v2998, %v3117
      %v3119 = vsel %vm3018, %v2999, %v3118
      %v3120 = vsel %vm3020, %v3000, %v3119
      %v3121 = vsel %vm3022, %v3001, %v3120
      %v3122 = vsel %vm3010, %v3003, %v3002
      %v3123 = vsel %vm3012, %v3004, %v3122
      %v3124 = vsel %vm3014, %v3005, %v3123
      %v3125 = vsel %vm3016, %v3006, %v3124
      %v3126 = vsel %vm3018, %v3007, %v3125
      %v3127 = vsel %vm3020, %v3008, %v3126
      %v3128 = vsel %vm3022, %v3009, %v3127
      %v3129 = vpack.c.b16 %v3023, %v3023
      %v3130 = vpack.c.b16 %v3030, %v3030
      %v3131 = vpack.c.b16 %v3037, %v3037
      %v3132 = vpack.c.b16 %v3044, %v3044
      %v3133 = vpack.c.b16 %v3051, %v3051
      %v3134 = vpack.c.b16 %v3058, %v3058
      %v3135 = vpack.c.b16 %v3065, %v3065
      %v3136 = vpack.c.b16 %v3072, %v3072
      %v3137 = vpack.c.b16 %v3079, %v3079
      %v3138 = vpack.c.b16 %v3086, %v3086
      %v3139 = vpack.c.b16 %v3093, %v3093
      %v3140 = vpack.c.b16 %v3100, %v3100
      %v3141 = vpack.c.b16 %v3107, %v3107
      %v3142 = vpack.c.b16 %v3114, %v3114
      %v3143 = vpack.c.b16 %v3121, %v3121
      %v3144 = vpack.c.b16 %v3128, %v3128
      %vm3161 = vcmask 519168
      %3162 = vst.msk [vmem:[%s145] sm:$0xf] %vm3161, %v3129
      %3163 = vst.msk [vmem:[%s145 + $0x4] sm:$0xf] %vm3161, %v3130
      %3164 = vst.msk [vmem:[%s145 + $0x8] sm:$0xf] %vm3161, %v3131
      %3165 = vst.msk [vmem:[%s145 + $0xc] sm:$0xf] %vm3161, %v3132
      %3166 = vst.msk [vmem:[%s145 + $0x10] sm:$0xf] %vm3161, %v3133
      %3167 = vst.msk [vmem:[%s145 + $0x14] sm:$0xf] %vm3161, %v3134
      %3168 = vst.msk [vmem:[%s145 + $0x18] sm:$0xf] %vm3161, %v3135
      %3169 = vst.msk [vmem:[%s145 + $0x1c] sm:$0xf] %vm3161, %v3136
      %3170 = vst.msk [vmem:[%s145 + $0x20] sm:$0xf] %vm3161, %v3137
      %3171 = vst.msk [vmem:[%s145 + $0x24] sm:$0xf] %vm3161, %v3138
      %3172 = vst.msk [vmem:[%s145 + $0x28] sm:$0xf] %vm3161, %v3139
      %3173 = vst.msk [vmem:[%s145 + $0x2c] sm:$0xf] %vm3161, %v3140
      %3174 = vst.msk [vmem:[%s145 + $0x30] sm:$0xf] %vm3161, %v3141
      %3175 = vst.msk [vmem:[%s145 + $0x34] sm:$0xf] %vm3161, %v3142
      %3176 = vst.msk [vmem:[%s145 + $0x38] sm:$0xf] %vm3161, %v3143
      %3177 = vst.msk [vmem:[%s145 + $0x3c] sm:$0xf] %vm3161, %v3144
      %s3178 = smul.u32 16, %s13
      %p3179 = scmp.lt.s32.totalorder %s3178, 31
      %s3180 = scalar_select %p3179, %s3178, 31
      %s3181 = smul.addr %s3180, 4
      %s3182 = scalar_lea.vmem %s2, %s3181
      // Predicated region
      $region29: #{tpu_custom_call.1} parent=27 // pred_check
        %p3183 = pneg %p78
      $region30: #{tpu_custom_call.1} parent=27 // pred_check_branch
        %3185 = sbr.rel (%p3183) target = $region32
      $region31: #{tpu_custom_call.1} parent=27 // pred_region
        %s3186 = smul.u32 16, %s13
      $region32: #{tpu_custom_call.1} parent=27 // pred_fallthru
        _
    $region28: #{tpu_custom_call.1} parent=5 // pred_fallthru
      _
    %p3187 = scmp.le.s32.totalorder 2, %s8
    // Predicated region
    $region33: #{tpu_custom_call.1} parent=5 // pred_check
      %p3188 = pneg %p3187
    $region34: #{tpu_custom_call.1} parent=5 // pred_check_branch
      %3190 = sbr.rel (%p3188) target = $region36
    $region35: #{tpu_custom_call.1} parent=5 // pred_region
      %s3191 = ssub.s32 %s8, 2
      // Predicated region
      $region37: #{tpu_custom_call.1} parent=35 // pred_check
        %p3192 = pneg %p84
      $region38: #{tpu_custom_call.1} parent=35 // pred_check_branch
        %3194 = sbr.rel (%p3192) target = $region40
      $region39: #{tpu_custom_call.1} parent=35 // pred_region
        %s3195 = smul.u32 16, %s14
        %p3196 = scmp.lt.s32.totalorder %s3195, 31
        %s3197 = scalar_select %p3196, %s3195, 31
        %s3198 = smul.addr %s3197, 4
        %s3199 = scalar_lea.vmem %s2, %s3198
      $region40: #{tpu_custom_call.1} parent=35 // pred_fallthru
        _
    $region36: #{tpu_custom_call.1} parent=5 // pred_fallthru
      _
  $region6: #{tpu_custom_call.1} parent=0 // loop_footer
    %s12 = sadd.s32 1, %s8
  $region7: #{tpu_custom_call.1} parent=0 // loop_footer_branch
    %7 = sbr.rel target = $region3
  $region8: #{tpu_custom_call.1} parent=0 // loop_exit
    _

</llo_original>
